<compile_context>
chip_gen: v5e
topology: v5e:2x2
jax: 0.10.0
libtpu: 0.0.40
codegen_flags: <defaults>
</compile_context>

<pallas_src>
import functools

import jax
import jax.numpy as jnp
from jax.experimental import pallas as pl
from jax.experimental.pallas import tpu as pltpu


def _round_up(x, m):
    return (x + m - 1) // m * m


def _physical_vmem_bytes():
    """Physical VMEM of the local TPU (128 MiB on v5e/v6e, 64 MiB on v7x)."""
    try:
        return int(pltpu.get_tpu_info().vmem_capacity_bytes)
    except Exception:  # older jaxlib / query unavailable -> be conservative
        return 64 * 1024 * 1024


def _vmem_block_bytes(shape, itemsize):
    """Approximate VMEM footprint of one buffer holding `shape` (minor dim
    padded to 128 lanes, second-minor to the 8-sublane tile)."""
    if len(shape) < 2:
        return _round_up(int(shape[0]) if shape else 1, 128) * itemsize
    lead = 1
    for d in shape[:-2]:
        lead *= int(d)
    return (lead * _round_up(int(shape[-2]), 8) *
            _round_up(int(shape[-1]), 128) * itemsize)


def _pick_row_tile(ho, wo, n_batch):
    """Pick th dividing ho.  Larger tiles amortize the ~0.35us/step grid
    overhead and the MXU weight push, so target th*wo in ~[256, 1024]
    (8-aligned; 256-multiples preferred to fill the 256-wide MXU); only insist
    on >=2 row tiles when the batch alone cannot feed both TensorCores."""
    best, best_key = ho, None
    for th in range(1, ho + 1):
        if ho % th:
            continue
        m = th * wo
        key = (
            (m % 8 == 0) or th == ho,          # sublane-aligned output block
            m <= 1024,                          # bound f32 intermediates
            m >= 256,                           # amortize per-step overhead
            m % 256 == 0,                       # fill the 256-wide MXU M dim
            (n_batch >= 2) or (ho // th >= 2),  # keep megacore fed when N==1
            m,                                  # then: as large as allowed
        )
        if best_key is None or key > best_key:
            best_key, best = key, th
    return best


def _dsc_kernel(x_ref, wdw_ref, b1_ref, wpw_ref, b2_ref, o_ref, *, th, wo,
                stride):
    """One (batch, row-tile) grid step.

    x_ref  : (H+2, W+2, Cdp)  zero-padded NHWC input (resident per image)
    wdw_ref: (3, 3, Cdp)      depthwise weights with BN1 scale folded in (f32)
    b1_ref : (1, Cdp)         BN1 bias (f32)
    wpw_ref: (Cdp, Cop)       pointwise weights with BN2 scale folded in (bf16)
    b2_ref : (1, Cop)         BN2 bias (f32)
    o_ref  : (th*wo, Cop)     output rows of this tile, channels on lanes
    """
    s = stride
    cdp = x_ref.shape[-1]
    row0 = pl.multiple_of(pl.program_id(1) * (th * s), th * s)
    span = (th - 1) * s + 3
    xw = x_ref[pl.ds(row0, span), :, :].astype(jnp.float32)   # (span, W+2, Cdp)
    wdw = wdw_ref[...].astype(jnp.float32)                    # (3, 3, Cdp)

    # Depthwise 3x3.  The costly kw shifts (sublane axis) are hoisted out of
    # the kh loop: three W-shifted slabs of the row window instead of nine tap
    # temporaries; the kh taps are cheap leading-axis slices of those slabs.
    # The stride is applied directly in the slices (static strides), and the
    # accumulator is initialized from the first tap.
    acc = None
    for kw in range(3):
        wslab = jax.lax.slice_in_dim(xw, kw, kw + (wo - 1) * s + 1, s,
                                     axis=1)                  # (span, wo, Cdp)
        for kh in range(3):
            tap = jax.lax.slice_in_dim(wslab, kh, kh + (th - 1) * s + 1, s,
                                       axis=0)                # (th, wo, Cdp)
            contrib = tap * wdw[kh, kw]
            acc = contrib if acc is None else acc + contrib

    # BN1 (scale folded into wdw) + ReLU.
    y = jnp.maximum(acc + b1_ref[0].astype(jnp.float32), 0.0)

    # Pointwise 1x1 conv == lane-dense (th*wo, Cdp) x (Cdp, Cop) MXU matmul,
    # fed in bf16 with f32 accumulation (bf16-native MXU).
    y2 = y.astype(jnp.bfloat16).reshape(th * wo, cdp)
    z = jnp.dot(y2, wpw_ref[...], preferred_element_type=jnp.float32)

    # BN2 (scale folded into wpw) + ReLU; store the slab directly.
    z = jnp.maximum(z + b2_ref[0].astype(jnp.float32), 0.0)
    o_ref[...] = z.astype(o_ref.dtype)


@functools.partial(jax.jit, static_argnames=("stride", "nchw"))
def depthwise_separable_conv(x_nchw, w_dw_hwc, scale1, bias1, w_pw, scale2,
                             bias2, *, stride, nchw=True):
    """x_nchw: (N, Cin, H, W) PyTorch layout.  Returns (N, Cout, Ho, Wo), or
    the lane-padded (N, Ho, Wo, Cop) NHWC slab when nchw=False (fusion)."""
    N, Cin, H, W = x_nchw.shape
    Cout = w_pw.shape[1]
    Ho = (H - 1) // stride + 1
    Wo = (W - 1) // stride + 1
    Cdp = _round_up(Cin, 16)     # depthwise / matmul-K channels (not 128!)
    Cop = _round_up(Cout, 128)   # lane-dense pointwise output channels

    # NCHW -> NHWC; one pad op adds the 1-pixel spatial halo and the (few)
    # zero channels up to Cdp (fuses with the layout copy of the transpose).
    x = jnp.transpose(x_nchw, (0, 2, 3, 1))
    x = jnp.pad(x, ((0, 0), (1, 1), (1, 1), (0, Cdp - Cin)))

    # Fold eval-mode BN scales into the conv weights; keep only the biases.
    w_dw = (w_dw_hwc * scale1[None, None, :]).astype(jnp.float32)
    w_dw = jnp.pad(w_dw, ((0, 0), (0, 0), (0, Cdp - Cin)))
    b1 = jnp.pad(bias1, (0, Cdp - Cin)).reshape(1, Cdp).astype(jnp.float32)
    w_pw_s = w_pw * scale2[None, :]
    w_pw_s = jnp.pad(w_pw_s, ((0, Cdp - Cin), (0, Cop - Cout)))
    w_pw_s = w_pw_s.astype(jnp.bfloat16)          # bf16 RHS for the MXU
    b2 = jnp.pad(bias2, (0, Cop - Cout)).reshape(1, Cop).astype(jnp.float32)

    th = _pick_row_tile(Ho, Wo, N)
    n_row_tiles = Ho // th
    span = (th - 1) * stride + 3

    kern = functools.partial(_dsc_kernel, th=th, wo=Wo, stride=stride)

    # Scheduler hints.
    out_itemsize = jnp.dtype(x_nchw.dtype).itemsize
    flops = 2 * N * Ho * Wo * (9 * Cdp + Cdp * Cop)
    bytes_accessed = (4 * N * (H + 2) * (W + 2) * Cdp            # image
                      + 4 * (9 * Cdp + Cdp + Cop)                # w_dw, b1, b2
                      + 2 * Cdp * Cop                            # w_pw (bf16)
                      + out_itemsize * N * Ho * Wo * Cop)        # output

    # VMEM budget: double-buffered blocks + in-kernel f32 temporaries, capped
    # per generation (~90 MiB on 128 MiB parts, ~45 MiB on v7x).
    img_b = _vmem_block_bytes((H + 2, W + 2, Cdp), 4)
    wgt_b = (_vmem_block_bytes((3, 3, Cdp), 4) + _vmem_block_bytes((1, Cdp), 4)
             + _vmem_block_bytes((Cdp, Cop), 2) + _vmem_block_bytes((1, Cop), 4))
    out_b = _vmem_block_bytes((th * Wo, Cop), out_itemsize)
    inter_b = (_vmem_block_bytes((span, W + 2, Cdp), 4)          # row window
               + 3 * _vmem_block_bytes((span, Wo, Cdp), 4)       # kw slabs
               + 3 * _vmem_block_bytes((th, Wo, Cdp), 4)         # tap/acc/y
               + _vmem_block_bytes((th * Wo, Cdp), 2)            # bf16 LHS
               + 2 * _vmem_block_bytes((th * Wo, Cop), 4))       # matmul + relu
    per_step = 2 * (img_b + wgt_b + out_b) + inter_b
    phys = _physical_vmem_bytes()
    vmem_limit = int(min(0.7 * phys, max(16 * 1024 * 1024, 1.5 * per_step)))

    out_flat = pl.pallas_call(
        kern,
        out_shape=jax.ShapeDtypeStruct((N, Ho * Wo, Cop), x_nchw.dtype),
        grid_spec=pltpu.PrefetchScalarGridSpec(
            num_scalar_prefetch=0,
            grid=(N, n_row_tiles),
            in_specs=[
                # Padded image: resident across the row tiles of one image
                # (block index only changes with n) -> DMA'd once per image.
                pl.BlockSpec((None, H + 2, W + 2, Cdp),
                             lambda n, t: (n, 0, 0, 0)),
                pl.BlockSpec((3, 3, Cdp), lambda n, t: (0, 0, 0)),
                pl.BlockSpec((1, Cdp), lambda n, t: (0, 0)),
                pl.BlockSpec((Cdp, Cop), lambda n, t: (0, 0)),
                pl.BlockSpec((1, Cop), lambda n, t: (0, 0)),
            ],
            out_specs=pl.BlockSpec((None, th * Wo, Cop),
                                   lambda n, t: (n, t, 0)),
        ),
        compiler_params=pltpu.CompilerParams(
            dimension_semantics=("parallel", "parallel"),
            vmem_limit_bytes=vmem_limit),
        cost_estimate=pl.CostEstimate(flops=flops, transcendentals=0,
                                      bytes_accessed=bytes_accessed),
    )(x, w_dw, b1, w_pw_s, b2)

    out = out_flat.reshape(N, Ho, Wo, Cop)
    if not nchw:
        return out   # lane-padded NHWC slab for fusion with the next block
    # (N, Ho, Wo, Cop) -> slice channels -> NCHW for the PyTorch contract.
    return jnp.transpose(out[..., :Cout], (0, 3, 1, 2))


def _reference(x_nchw, w_dw_hwc, w_pw, g1, bt1, m1, v1, g2, bt2, m2, v2,
               stride, eps=1e-5):
    """Pure-JAX NCHW reference mirroring the PyTorch module in eval mode."""
    Cin = x_nchw.shape[1]
    w_dw_oihw = jnp.transpose(w_dw_hwc, (2, 0, 1))[:, None, :, :]
    y = jax.lax.conv_general_dilated(
        x_nchw, w_dw_oihw, window_strides=(stride, stride),
        padding=((1, 1), (1, 1)), feature_group_count=Cin,
        dimension_numbers=("NCHW", "OIHW", "NCHW"))
    y = (y - m1[None, :, None, None]) / jnp.sqrt(v1 + eps)[None, :, None, None]
    y = y * g1[None, :, None, None] + bt1[None, :, None, None]
    y = jnp.maximum(y, 0.0)
    w_pw_oihw = jnp.transpose(w_pw, (1, 0))[:, :, None, None]
    z = jax.lax.conv_general_dilated(
        y, w_pw_oihw, window_strides=(1, 1), padding=((0, 0), (0, 0)),
        dimension_numbers=("NCHW", "OIHW", "NCHW"))
    z = (z - m2[None, :, None, None]) / jnp.sqrt(v2 + eps)[None, :, None, None]
    z = z * g2[None, :, None, None] + bt2[None, :, None, None]
    return jnp.maximum(z, 0.0)


if __name__ == "__main__":
    N, Cin, Cout, H, W = 2, 4, 8, 16, 16
    stride = 1
    eps = 1e-5

    key = jax.random.PRNGKey(0)
    keys = jax.random.split(key, 11)

    x = jax.random.normal(keys[0], (N, Cin, H, W), jnp.float32)
    # depthwise Conv2d(Cin, Cin, 3, groups=Cin, bias=False): stored as (3,3,Cin)
    w_dw = jax.random.normal(keys[1], (3, 3, Cin), jnp.float32) * 0.3
    # pointwise Conv2d(Cin, Cout, 1, bias=False): stored as (Cin, Cout)
    w_pw = jax.random.normal(keys[2], (Cin, Cout), jnp.float32) * 0.3

    g1 = jax.random.normal(keys[3], (Cin,), jnp.float32) * 0.1 + 1.0
    bt1 = jax.random.normal(keys[4], (Cin,), jnp.float32) * 0.1
    m1 = jax.random.normal(keys[5], (Cin,), jnp.float32) * 0.1
    v1 = jnp.abs(jax.random.normal(keys[6], (Cin,), jnp.float32)) * 0.5 + 0.5

    g2 = jax.random.normal(keys[7], (Cout,), jnp.float32) * 0.1 + 1.0
    bt2 = jax.random.normal(keys[8], (Cout,), jnp.float32) * 0.1
    m2 = jax.random.normal(keys[9], (Cout,), jnp.float32) * 0.1
    v2 = jnp.abs(jax.random.normal(keys[10], (Cout,), jnp.float32)) * 0.5 + 0.5

    # Fold eval-mode BN into per-channel (scale, bias).
    scale1 = g1 / jnp.sqrt(v1 + eps)
    bias1 = bt1 - m1 * scale1
    scale2 = g2 / jnp.sqrt(v2 + eps)
    bias2 = bt2 - m2 * scale2

    out = depthwise_separable_conv(x, w_dw, scale1, bias1, w_pw, scale2,
                                   bias2, stride=stride)
    out = jax.block_until_ready(out)

    ref = _reference(x, w_dw, w_pw, g1, bt1, m1, v1, g2, bt2, m2, v2, stride,
                     eps)
    assert out.shape == ref.shape, (out.shape, ref.shape)
    # Tolerance loosened slightly vs the pure-f32 path: the pointwise matmul
    # now runs bf16 x bf16 with f32 accumulation on the MXU.
    assert jnp.allclose(out, ref, rtol=2.5e-2, atol=2.5e-2), float(
        jnp.max(jnp.abs(out - ref)))

    print("KERNEL_OK")
</pallas_src>

<mosaic_0001>
module attributes {stable_mosaic.version = 11 : i64} {
  func.func @_dsc_kernel(%arg0: i32, %arg1: i32, %arg2: memref<1x18x18x16xf32, #tpu.memory_space<vmem>>, %arg3: memref<3x3x16xf32, #tpu.memory_space<vmem>>, %arg4: memref<1x16xf32, #tpu.memory_space<vmem>>, %arg5: memref<16x128xbf16, #tpu.memory_space<vmem>>, %arg6: memref<1x128xf32, #tpu.memory_space<vmem>>, %arg7: memref<1x256x128xf32, #tpu.memory_space<vmem>>) attributes {dimension_semantics = [#tpu.dimension_semantics<parallel>, #tpu.dimension_semantics<parallel>], iteration_bounds = array<i64: 2, 1>, scalar_prefetch = 0 : i64, scratch_operands = 0 : i64, tpu.core_type = #tpu.core_type<tc>, window_params = [{transform_indices = @transform_0, window_bounds = array<i64: 1, 18, 18, 16>}, {pipeline_mode = #tpu.pipeline_mode<synchronous>, transform_indices = @transform_1, window_bounds = array<i64: 3, 3, 16>}, {pipeline_mode = #tpu.pipeline_mode<synchronous>, transform_indices = @transform_2, window_bounds = array<i64: 1, 16>}, {pipeline_mode = #tpu.pipeline_mode<synchronous>, transform_indices = @transform_3, window_bounds = array<i64: 16, 128>}, {pipeline_mode = #tpu.pipeline_mode<synchronous>, transform_indices = @transform_4, window_bounds = array<i64: 1, 128>}, {transform_indices = @transform_5, window_bounds = array<i64: 1, 256, 128>}]} {
    %c16_i32 = arith.constant 16 : i32
    %0 = arith.muli %arg1, %c16_i32 : i32
    %1 = tpu.assume_multiple %0, 16 : i32
    %c0 = arith.constant 0 : index
    %2 = arith.index_cast %1 : i32 to index
    %c0_0 = arith.constant 0 : index
    %c0_1 = arith.constant 0 : index
    %3 = vector.load %arg2[%c0, %2, %c0_0, %c0_1] : memref<1x18x18x16xf32, #tpu.memory_space<vmem>>, vector<1x18x18x16xf32>
    %4 = vector.shape_cast %3 : vector<1x18x18x16xf32> to vector<18x18x16xf32>
    %c0_2 = arith.constant 0 : index
    %c0_3 = arith.constant 0 : index
    %c0_4 = arith.constant 0 : index
    %5 = vector.load %arg3[%c0_2, %c0_3, %c0_4] : memref<3x3x16xf32, #tpu.memory_space<vmem>>, vector<3x3x16xf32>
    %6 = vector.extract_strided_slice %4 {offsets = [0, 0, 0], sizes = [18, 16, 16], strides = [1, 1, 1]} : vector<18x18x16xf32> to vector<18x16x16xf32>
    %7 = vector.extract_strided_slice %6 {offsets = [0, 0, 0], sizes = [16, 16, 16], strides = [1, 1, 1]} : vector<18x16x16xf32> to vector<16x16x16xf32>
    %8 = vector.extract_strided_slice %5 {offsets = [0, 0, 0], sizes = [1, 1, 16], strides = [1, 1, 1]} : vector<3x3x16xf32> to vector<1x1x16xf32>
    %9 = vector.shape_cast %8 : vector<1x1x16xf32> to vector<16xf32>
    %10 = vector.shape_cast %9 : vector<16xf32> to vector<1x1x16xf32>
    %11 = vector.broadcast %10 : vector<1x1x16xf32> to vector<16x16x16xf32>
    %12 = arith.mulf %7, %11 : vector<16x16x16xf32>
    %13 = vector.extract_strided_slice %6 {offsets = [1, 0, 0], sizes = [16, 16, 16], strides = [1, 1, 1]} : vector<18x16x16xf32> to vector<16x16x16xf32>
    %14 = vector.extract_strided_slice %5 {offsets = [1, 0, 0], sizes = [1, 1, 16], strides = [1, 1, 1]} : vector<3x3x16xf32> to vector<1x1x16xf32>
    %15 = vector.shape_cast %14 : vector<1x1x16xf32> to vector<16xf32>
    %16 = vector.shape_cast %15 : vector<16xf32> to vector<1x1x16xf32>
    %17 = vector.broadcast %16 : vector<1x1x16xf32> to vector<16x16x16xf32>
    %18 = arith.mulf %13, %17 : vector<16x16x16xf32>
    %19 = arith.addf %12, %18 : vector<16x16x16xf32>
    %20 = vector.extract_strided_slice %6 {offsets = [2, 0, 0], sizes = [16, 16, 16], strides = [1, 1, 1]} : vector<18x16x16xf32> to vector<16x16x16xf32>
    %21 = vector.extract_strided_slice %5 {offsets = [2, 0, 0], sizes = [1, 1, 16], strides = [1, 1, 1]} : vector<3x3x16xf32> to vector<1x1x16xf32>
    %22 = vector.shape_cast %21 : vector<1x1x16xf32> to vector<16xf32>
    %23 = vector.shape_cast %22 : vector<16xf32> to vector<1x1x16xf32>
    %24 = vector.broadcast %23 : vector<1x1x16xf32> to vector<16x16x16xf32>
    %25 = arith.mulf %20, %24 : vector<16x16x16xf32>
    %26 = arith.addf %19, %25 : vector<16x16x16xf32>
    %27 = vector.extract_strided_slice %4 {offsets = [0, 1, 0], sizes = [18, 16, 16], strides = [1, 1, 1]} : vector<18x18x16xf32> to vector<18x16x16xf32>
    %28 = vector.extract_strided_slice %27 {offsets = [0, 0, 0], sizes = [16, 16, 16], strides = [1, 1, 1]} : vector<18x16x16xf32> to vector<16x16x16xf32>
    %29 = vector.extract_strided_slice %5 {offsets = [0, 1, 0], sizes = [1, 1, 16], strides = [1, 1, 1]} : vector<3x3x16xf32> to vector<1x1x16xf32>
    %30 = vector.shape_cast %29 : vector<1x1x16xf32> to vector<16xf32>
    %31 = vector.shape_cast %30 : vector<16xf32> to vector<1x1x16xf32>
    %32 = vector.broadcast %31 : vector<1x1x16xf32> to vector<16x16x16xf32>
    %33 = arith.mulf %28, %32 : vector<16x16x16xf32>
    %34 = arith.addf %26, %33 : vector<16x16x16xf32>
    %35 = vector.extract_strided_slice %27 {offsets = [1, 0, 0], sizes = [16, 16, 16], strides = [1, 1, 1]} : vector<18x16x16xf32> to vector<16x16x16xf32>
    %36 = vector.extract_strided_slice %5 {offsets = [1, 1, 0], sizes = [1, 1, 16], strides = [1, 1, 1]} : vector<3x3x16xf32> to vector<1x1x16xf32>
    %37 = vector.shape_cast %36 : vector<1x1x16xf32> to vector<16xf32>
    %38 = vector.shape_cast %37 : vector<16xf32> to vector<1x1x16xf32>
    %39 = vector.broadcast %38 : vector<1x1x16xf32> to vector<16x16x16xf32>
    %40 = arith.mulf %35, %39 : vector<16x16x16xf32>
    %41 = arith.addf %34, %40 : vector<16x16x16xf32>
    %42 = vector.extract_strided_slice %27 {offsets = [2, 0, 0], sizes = [16, 16, 16], strides = [1, 1, 1]} : vector<18x16x16xf32> to vector<16x16x16xf32>
    %43 = vector.extract_strided_slice %5 {offsets = [2, 1, 0], sizes = [1, 1, 16], strides = [1, 1, 1]} : vector<3x3x16xf32> to vector<1x1x16xf32>
    %44 = vector.shape_cast %43 : vector<1x1x16xf32> to vector<16xf32>
    %45 = vector.shape_cast %44 : vector<16xf32> to vector<1x1x16xf32>
    %46 = vector.broadcast %45 : vector<1x1x16xf32> to vector<16x16x16xf32>
    %47 = arith.mulf %42, %46 : vector<16x16x16xf32>
    %48 = arith.addf %41, %47 : vector<16x16x16xf32>
    %49 = vector.extract_strided_slice %4 {offsets = [0, 2, 0], sizes = [18, 16, 16], strides = [1, 1, 1]} : vector<18x18x16xf32> to vector<18x16x16xf32>
    %50 = vector.extract_strided_slice %49 {offsets = [0, 0, 0], sizes = [16, 16, 16], strides = [1, 1, 1]} : vector<18x16x16xf32> to vector<16x16x16xf32>
    %51 = vector.extract_strided_slice %5 {offsets = [0, 2, 0], sizes = [1, 1, 16], strides = [1, 1, 1]} : vector<3x3x16xf32> to vector<1x1x16xf32>
    %52 = vector.shape_cast %51 : vector<1x1x16xf32> to vector<16xf32>
    %53 = vector.shape_cast %52 : vector<16xf32> to vector<1x1x16xf32>
    %54 = vector.broadcast %53 : vector<1x1x16xf32> to vector<16x16x16xf32>
    %55 = arith.mulf %50, %54 : vector<16x16x16xf32>
    %56 = arith.addf %48, %55 : vector<16x16x16xf32>
    %57 = vector.extract_strided_slice %49 {offsets = [1, 0, 0], sizes = [16, 16, 16], strides = [1, 1, 1]} : vector<18x16x16xf32> to vector<16x16x16xf32>
    %58 = vector.extract_strided_slice %5 {offsets = [1, 2, 0], sizes = [1, 1, 16], strides = [1, 1, 1]} : vector<3x3x16xf32> to vector<1x1x16xf32>
    %59 = vector.shape_cast %58 : vector<1x1x16xf32> to vector<16xf32>
    %60 = vector.shape_cast %59 : vector<16xf32> to vector<1x1x16xf32>
    %61 = vector.broadcast %60 : vector<1x1x16xf32> to vector<16x16x16xf32>
    %62 = arith.mulf %57, %61 : vector<16x16x16xf32>
    %63 = arith.addf %56, %62 : vector<16x16x16xf32>
    %64 = vector.extract_strided_slice %49 {offsets = [2, 0, 0], sizes = [16, 16, 16], strides = [1, 1, 1]} : vector<18x16x16xf32> to vector<16x16x16xf32>
    %65 = vector.extract_strided_slice %5 {offsets = [2, 2, 0], sizes = [1, 1, 16], strides = [1, 1, 1]} : vector<3x3x16xf32> to vector<1x1x16xf32>
    %66 = vector.shape_cast %65 : vector<1x1x16xf32> to vector<16xf32>
    %67 = vector.shape_cast %66 : vector<16xf32> to vector<1x1x16xf32>
    %68 = vector.broadcast %67 : vector<1x1x16xf32> to vector<16x16x16xf32>
    %69 = arith.mulf %64, %68 : vector<16x16x16xf32>
    %70 = arith.addf %63, %69 : vector<16x16x16xf32>
    %c0_5 = arith.constant 0 : index
    %c0_6 = arith.constant 0 : index
    %71 = vector.load %arg4[%c0_5, %c0_6] : memref<1x16xf32, #tpu.memory_space<vmem>>, vector<1x16xf32>
    %72 = vector.shape_cast %71 : vector<1x16xf32> to vector<16xf32>
    %73 = vector.shape_cast %72 : vector<16xf32> to vector<1x1x16xf32>
    %74 = vector.broadcast %73 : vector<1x1x16xf32> to vector<16x16x16xf32>
    %75 = arith.addf %70, %74 : vector<16x16x16xf32>
    %cst = arith.constant 0.000000e+00 : f32
    %76 = vector.broadcast %cst : f32 to vector<16x16x16xf32>
    %77 = arith.maximumf %75, %76 : vector<16x16x16xf32>
    %78 = arith.truncf %77 : vector<16x16x16xf32> to vector<16x16x16xbf16>
    %79 = vector.shape_cast %78 : vector<16x16x16xbf16> to vector<256x16xbf16>
    %c0_7 = arith.constant 0 : index
    %c0_8 = arith.constant 0 : index
    %80 = vector.load %arg5[%c0_7, %c0_8] : memref<16x128xbf16, #tpu.memory_space<vmem>>, vector<16x128xbf16>
    %cst_9 = arith.constant dense<0.000000e+00> : vector<256x128xf32>
    %81 = tpu.matmul %79, %80, %cst_9 {dimension_numbers = #tpu.dot_dimension_numbers<[1], [0], [0], [1], [0, 0, 1, 1], [], []>} : vector<256x16xbf16>, vector<16x128xbf16>, vector<256x128xf32> -> vector<256x128xf32>
    %c0_10 = arith.constant 0 : index
    %c0_11 = arith.constant 0 : index
    %82 = vector.load %arg6[%c0_10, %c0_11] : memref<1x128xf32, #tpu.memory_space<vmem>>, vector<1x128xf32>
    %83 = vector.shape_cast %82 : vector<1x128xf32> to vector<128xf32>
    %84 = vector.shape_cast %83 : vector<128xf32> to vector<1x128xf32>
    %85 = vector.broadcast %84 : vector<1x128xf32> to vector<256x128xf32>
    %86 = arith.addf %81, %85 : vector<256x128xf32>
    %cst_12 = arith.constant 0.000000e+00 : f32
    %87 = vector.broadcast %cst_12 : f32 to vector<256x128xf32>
    %88 = arith.maximumf %86, %87 : vector<256x128xf32>
    %c0_13 = arith.constant 0 : index
    %c0_14 = arith.constant 0 : index
    %c0_15 = arith.constant 0 : index
    %89 = vector.load %arg7[%c0_13, %c0_14, %c0_15] : memref<1x256x128xf32, #tpu.memory_space<vmem>>, vector<1x256x128xf32>
    %90 = vector.shape_cast %89 : vector<1x256x128xf32> to vector<256x128xf32>
    %91 = vector.shape_cast %88 : vector<256x128xf32> to vector<1x256x128xf32>
    tpu.vector_store %arg7[%c0_13, %c0_14, %c0_15], %91 {strides = array<i32>} : memref<1x256x128xf32, #tpu.memory_space<vmem>>, vector<1x256x128xf32>,
    return
  }
  func.func @transform_0(%arg0: i32, %arg1: i32) -> (i32, i32, i32, i32) {
    %c0_i32 = arith.constant 0 : i32
    %c0_i32_0 = arith.constant 0 : i32
    %c0_i32_1 = arith.constant 0 : i32
    %c0_i32_2 = arith.constant 0 : i32
    return %arg0, %c0_i32, %c0_i32_0, %c0_i32_1 : i32, i32, i32, i32
  }
  func.func @transform_1(%arg0: i32, %arg1: i32) -> (i32, i32, i32) {
    %c0_i32 = arith.constant 0 : i32
    %c0_i32_0 = arith.constant 0 : i32
    %c0_i32_1 = arith.constant 0 : i32
    %c0_i32_2 = arith.constant 0 : i32
    return %c0_i32, %c0_i32_0, %c0_i32_1 : i32, i32, i32
  }
  func.func @transform_2(%arg0: i32, %arg1: i32) -> (i32, i32) {
    %c0_i32 = arith.constant 0 : i32
    %c0_i32_0 = arith.constant 0 : i32
    %c0_i32_1 = arith.constant 0 : i32
    return %c0_i32, %c0_i32_0 : i32, i32
  }
  func.func @transform_3(%arg0: i32, %arg1: i32) -> (i32, i32) {
    %c0_i32 = arith.constant 0 : i32
    %c0_i32_0 = arith.constant 0 : i32
    %c0_i32_1 = arith.constant 0 : i32
    return %c0_i32, %c0_i32_0 : i32, i32
  }
  func.func @transform_4(%arg0: i32, %arg1: i32) -> (i32, i32) {
    %c0_i32 = arith.constant 0 : i32
    %c0_i32_0 = arith.constant 0 : i32
    %c0_i32_1 = arith.constant 0 : i32
    return %c0_i32, %c0_i32_0 : i32, i32
  }
  func.func @transform_5(%arg0: i32, %arg1: i32) -> (i32, i32, i32) {
    %c0_i32 = arith.constant 0 : i32
    %c0_i32_0 = arith.constant 0 : i32
    return %arg0, %arg1, %c0_i32 : i32, i32, i32
  }
}

</mosaic_0001>

<llo_original>
// kernel: depthwise_separable_conv.1
$region0: #{depthwise_separable_conv.1}
  #allocation0 [shape = 'u32[]', space=smem, size = 0x4, offset = 0x4, fixed_abs, tag = 'smem constant byte address 0x4 - core index']
  #allocation1 [shape = 'u32[72,128]{1,0:T(1,128)}', space=vmem, size = 0x9000, scoped, tag = 'internal scratch']
  %s0 = inlined_call_operand.vmem [shape: f32[2,18,18,16], index: 0, kind: input, shape index: {}]
  %s1 = inlined_call_operand.vmem [shape: f32[3,3,16], index: 1, kind: input, shape index: {}]
  %s2 = inlined_call_operand.vmem [shape: f32[1,16], index: 2, kind: input, shape index: {}]
  %s3 = inlined_call_operand.vmem [shape: bf16[16,128], index: 3, kind: input, shape index: {}]
  %s4 = inlined_call_operand.vmem [shape: f32[1,128], index: 4, kind: input, shape index: {}]
  %s5 = inlined_call_operand.vmem [shape: f32[2,256,128], index: 5, kind: output, shape index: {}]
  %s6 = sld [smem:[#allocation0]]
  $region53: #{depthwise_separable_conv.1} parent=0
    _
  %s8 = ssub.s32 1, %s6
  %s9 = scalar_select 0, %s8, %s6
  loop: start=0, step=1, limit=4
  $region2: #{depthwise_separable_conv.1} parent=0 // loop_pre_header
    _
  $region3: #{depthwise_separable_conv.1} parent=0 // loop_header
    %s11 = sphi 0, %s15
    %p12 = scmp.ge.s32.totalorder %s11, 4
    %s18 = sphi 0, %s30
    %s19 = sphi 0, %s26
    %s20 = sphi 0, %s18
    %s21 = sphi 0, %s19
    %s22 = sphi 0, %s20
    %s23 = sphi 0, %s21
    %s33 = sphi 0, %s35
    %s36 = sphi 0, %s33
    %s37 = sphi 0, %s36
    %s53 = sphi 0, %s37
    %s57 = sphi 0, %s57
    %s59 = sphi 0, %s57
    %s60 = sphi 0, %s59
    %s74 = sphi 0, %s60
    %s78 = sphi 0, %s78
    %s80 = sphi 0, %s78
    %s81 = sphi 0, %s80
    %s95 = sphi 0, %s81
    %s99 = sphi 0, %s99
    %s101 = sphi 0, %s99
    %s102 = sphi 0, %s101
    %s116 = sphi 0, %s102
    %s120 = sphi 0, %s120
    %s122 = sphi 0, %s120
    %s123 = sphi 0, %s122
    %s137 = sphi 0, %s123
    %s145 = sphi 0, %s147
    %s148 = sphi 0, %s145
    %s149 = sphi 0, %s148
    %s165 = sphi 0, %s149
  $region4: #{depthwise_separable_conv.1} parent=0 // loop_header_branch
    %14 = sbr.rel (%p12) target = $region8
  $region5: #{depthwise_separable_conv.1} parent=0 // loop_body
    %s16 = ssub.s32 %s11, 1
    %s17 = ssub.s32 %s11, 2
    %s24 = sadd.s32 1, %s19
    %p25 = scmp.ge.s32.totalorder %s24, 1
    %s26 = scalar_select %p25, 0, %s24
    %s27 = sadd.s32 1, %s18
    %s28 = scalar_select %p25, %s27, %s18
    %p29 = scmp.ge.s32.totalorder %s28, 2
    %s30 = scalar_select %p29, 0, %s28
    %s31 = ssub.s32 %s18, %s30
    %p32 = scmp.eq.s32.totalorder %s31, 0
    %s34 = sadd.s32 %s33, 1
    %s35 = scalar_select %p32, %s33, %s34
    %p38 = pneg %p32
    %p39 = scmp.eq.s32.totalorder %s11, 1
    %p40 = por %p38, %p39
    %p41 = scmp.ne.s32.totalorder %s33, %s36
    %p42 = scmp.eq.s32.totalorder %s11, 0
    %p43 = por %p41, %p42
    %p44 = scmp.ne.s32.totalorder %s33, %s36
    %p45 = scmp.eq.s32.totalorder %s16, 1
    %p46 = por %p44, %p45
    %p47 = scmp.ne.s32.totalorder %s36, %s37
    %p48 = scmp.eq.s32.totalorder %s16, 0
    %p49 = por %p47, %p48
    %p50 = scmp.ne.s32.totalorder %s36, %s37
    %p51 = scmp.eq.s32.totalorder %s17, 1
    %p52 = por %p50, %p51
    %p54 = scmp.ne.s32.totalorder %s37, %s53
    %p55 = scmp.eq.s32.totalorder %s17, 0
    %p56 = por %p54, %p55
    %s58 = sadd.s32 %s57, 1
    %p61 = scmp.eq.s32.totalorder %s11, 1
    %p62 = scmp.ne.s32.totalorder %s57, %s59
    %p63 = scmp.eq.s32.totalorder %s11, 0
    %p64 = por %p62, %p63
    %p65 = scmp.ne.s32.totalorder %s57, %s59
    %p66 = scmp.eq.s32.totalorder %s16, 1
    %p67 = por %p65, %p66
    %p68 = scmp.ne.s32.totalorder %s59, %s60
    %p69 = scmp.eq.s32.totalorder %s16, 0
    %p70 = por %p68, %p69
    %p71 = scmp.ne.s32.totalorder %s59, %s60
    %p72 = scmp.eq.s32.totalorder %s17, 1
    %p73 = por %p71, %p72
    %p75 = scmp.ne.s32.totalorder %s60, %s74
    %p76 = scmp.eq.s32.totalorder %s17, 0
    %p77 = por %p75, %p76
    %s79 = sadd.s32 %s78, 1
    %p82 = scmp.eq.s32.totalorder %s11, 1
    %p83 = scmp.ne.s32.totalorder %s78, %s80
    %p84 = scmp.eq.s32.totalorder %s11, 0
    %p85 = por %p83, %p84
    %p86 = scmp.ne.s32.totalorder %s78, %s80
    %p87 = scmp.eq.s32.totalorder %s16, 1
    %p88 = por %p86, %p87
    %p89 = scmp.ne.s32.totalorder %s80, %s81
    %p90 = scmp.eq.s32.totalorder %s16, 0
    %p91 = por %p89, %p90
    %p92 = scmp.ne.s32.totalorder %s80, %s81
    %p93 = scmp.eq.s32.totalorder %s17, 1
    %p94 = por %p92, %p93
    %p96 = scmp.ne.s32.totalorder %s81, %s95
    %p97 = scmp.eq.s32.totalorder %s17, 0
    %p98 = por %p96, %p97
    %s100 = sadd.s32 %s99, 1
    %p103 = scmp.eq.s32.totalorder %s11, 1
    %p104 = scmp.ne.s32.totalorder %s99, %s101
    %p105 = scmp.eq.s32.totalorder %s11, 0
    %p106 = por %p104, %p105
    %p107 = scmp.ne.s32.totalorder %s99, %s101
    %p108 = scmp.eq.s32.totalorder %s16, 1
    %p109 = por %p107, %p108
    %p110 = scmp.ne.s32.totalorder %s101, %s102
    %p111 = scmp.eq.s32.totalorder %s16, 0
    %p112 = por %p110, %p111
    %p113 = scmp.ne.s32.totalorder %s101, %s102
    %p114 = scmp.eq.s32.totalorder %s17, 1
    %p115 = por %p113, %p114
    %p117 = scmp.ne.s32.totalorder %s102, %s116
    %p118 = scmp.eq.s32.totalorder %s17, 0
    %p119 = por %p117, %p118
    %s121 = sadd.s32 %s120, 1
    %p124 = scmp.eq.s32.totalorder %s11, 1
    %p125 = scmp.ne.s32.totalorder %s120, %s122
    %p126 = scmp.eq.s32.totalorder %s11, 0
    %p127 = por %p125, %p126
    %p128 = scmp.ne.s32.totalorder %s120, %s122
    %p129 = scmp.eq.s32.totalorder %s16, 1
    %p130 = por %p128, %p129
    %p131 = scmp.ne.s32.totalorder %s122, %s123
    %p132 = scmp.eq.s32.totalorder %s16, 0
    %p133 = por %p131, %p132
    %p134 = scmp.ne.s32.totalorder %s122, %s123
    %p135 = scmp.eq.s32.totalorder %s17, 1
    %p136 = por %p134, %p135
    %p138 = scmp.ne.s32.totalorder %s123, %s137
    %p139 = scmp.eq.s32.totalorder %s17, 0
    %p140 = por %p138, %p139
    %s141 = ssub.s32 %s18, %s30
    %s142 = ssub.s32 %s19, %s26
    %s143 = sor.u32 %s141, %s142
    %p144 = scmp.eq.s32.totalorder %s143, 0
    %s146 = sadd.s32 %s145, 1
    %s147 = scalar_select %p144, %s145, %s146
    %p150 = pneg %p144
    %p151 = scmp.eq.s32.totalorder %s11, 1
    %p152 = por %p150, %p151
    %p153 = scmp.ne.s32.totalorder %s145, %s148
    %p154 = scmp.eq.s32.totalorder %s11, 0
    %p155 = por %p153, %p154
    %p156 = scmp.ne.s32.totalorder %s145, %s148
    %p157 = scmp.eq.s32.totalorder %s16, 1
    %p158 = por %p156, %p157
    %p159 = scmp.ne.s32.totalorder %s148, %s149
    %p160 = scmp.eq.s32.totalorder %s16, 0
    %p161 = por %p159, %p160
    %p162 = scmp.ne.s32.totalorder %s148, %s149
    %p163 = scmp.eq.s32.totalorder %s17, 1
    %p164 = por %p162, %p163
    %p166 = scmp.ne.s32.totalorder %s149, %s165
    %p167 = scmp.eq.s32.totalorder %s17, 0
    %p168 = por %p166, %p167
    %p169 = scmp.le.s32.totalorder 1, %s11
    %p170 = scmp.lt.s32.totalorder %s11, 3
    %p171 = pnand %p169, %p170
    %p172 = pneg %p171
    // Predicated region
    $region9: #{depthwise_separable_conv.1} parent=5 // pred_check
      _
    $region10: #{depthwise_separable_conv.1} parent=5 // pred_check_branch
      %174 = sbr.rel (%p171) target = $region12
    $region11: #{depthwise_separable_conv.1} parent=5 // pred_region
      %s175 = ssub.s32 %s11, 1
      // Predicated region
      $region13: #{depthwise_separable_conv.1} parent=11 // pred_check
        %p176 = pneg %p70
      $region14: #{depthwise_separable_conv.1} parent=11 // pred_check_branch
        %178 = sbr.rel (%p176) target = $region16
      $region15: #{depthwise_separable_conv.1} parent=11 // pred_region
        _
      $region16: #{depthwise_separable_conv.1} parent=11 // pred_fallthru
        _
      // Predicated region
      $region17: #{depthwise_separable_conv.1} parent=11 // pred_check
        %p179 = pneg %p91
      $region18: #{depthwise_separable_conv.1} parent=11 // pred_check_branch
        %181 = sbr.rel (%p179) target = $region20
      $region19: #{depthwise_separable_conv.1} parent=11 // pred_region
        _
      $region20: #{depthwise_separable_conv.1} parent=11 // pred_fallthru
        _
      // Predicated region
      $region21: #{depthwise_separable_conv.1} parent=11 // pred_check
        %p182 = pneg %p112
      $region22: #{depthwise_separable_conv.1} parent=11 // pred_check_branch
        %184 = sbr.rel (%p182) target = $region24
      $region23: #{depthwise_separable_conv.1} parent=11 // pred_region
        _
      $region24: #{depthwise_separable_conv.1} parent=11 // pred_fallthru
        _
      // Predicated region
      $region25: #{depthwise_separable_conv.1} parent=11 // pred_check
        %p185 = pneg %p133
      $region26: #{depthwise_separable_conv.1} parent=11 // pred_check_branch
        %187 = sbr.rel (%p185) target = $region28
      $region27: #{depthwise_separable_conv.1} parent=11 // pred_region
        _
      $region28: #{depthwise_separable_conv.1} parent=11 // pred_fallthru
        _
    $region12: #{depthwise_separable_conv.1} parent=5 // pred_fallthru
      _
    %p188 = scmp.lt.s32.totalorder %s11, 2
    // Predicated region
    $region29: #{depthwise_separable_conv.1} parent=5 // pred_check
      %p189 = pneg %p188
    $region30: #{depthwise_separable_conv.1} parent=5 // pred_check_branch
      %191 = sbr.rel (%p189) target = $region32
    $region31: #{depthwise_separable_conv.1} parent=5 // pred_region
      // Predicated region
      $region33: #{depthwise_separable_conv.1} parent=31 // pred_check
        %p192 = pneg %p43
      $region34: #{depthwise_separable_conv.1} parent=31 // pred_check_branch
        %194 = sbr.rel (%p192) target = $region36
      $region35: #{depthwise_separable_conv.1} parent=31 // pred_region
        %p195 = scmp.lt.s32.totalorder %s18, 1
        %s196 = scalar_select %p195, %s18, 1
        %s197 = smul.addr %s196, 54
        %s198 = smul.addr %s197, 8
        %s199 = scalar_lea.vmem %s0, %s198
      $region36: #{depthwise_separable_conv.1} parent=31 // pred_fallthru
        _
    $region32: #{depthwise_separable_conv.1} parent=5 // pred_fallthru
      _
    %p200 = scmp.le.s32.totalorder 1, %s11
    %p201 = scmp.lt.s32.totalorder %s11, 3
    %p202 = pnand %p200, %p201
    %p203 = pneg %p202
    // Predicated region
    $region37: #{depthwise_separable_conv.1} parent=5 // pred_check
      _
    $region38: #{depthwise_separable_conv.1} parent=5 // pred_check_branch
      %205 = sbr.rel (%p202) target = $region40
    $region39: #{depthwise_separable_conv.1} parent=5 // pred_region
      %s206 = ssub.s32 %s11, 1
      %p207 = scmp.lt.s32.totalorder %s20, 1
      %s208 = scalar_select %p207, %s20, 1
      %s209 = smul.addr %s208, 54
      %s210 = smul.addr %s209, 8
      %s211 = scalar_lea.vmem %s0, %s210
      %p212 = pneg %p49
      %p213 = pneg %p46
      %p214 = pneg %p70
      %p215 = pneg %p67
      %p216 = pneg %p91
      %p217 = pneg %p88
      %p218 = pneg %p112
      %p219 = pneg %p109
      %p220 = pneg %p133
      %p221 = pneg %p130
      %p222 = pneg %p161
      %p223 = pneg %p158
      %s224 = smul.u32 32, %s21
      %p225 = scmp.lt.s32.totalorder %s20, 1
      %s226 = scalar_select %p225, %s20, 1
      %p227 = scmp.lt.s32.totalorder %s224, 31
      %s228 = scalar_select %p227, %s224, 31
      %s229 = smul.addr %s226, 32
      %s230 = sadd.s32 %s228, %s229
      %s231 = smul.addr %s230, 8
      %s232 = scalar_lea.vmem %s5, %s231
      %p233 = scmp.lt.s32.totalorder %s20, 1
      %s234 = scalar_select %p233, %s20, 1
      %s235 = smul.addr %s234, 54
      %s236 = smul.addr %s235, 8
      %s237 = scalar_lea.vmem %s0, %s236
      %s238 = smul.u32 32, %s21
      %p239 = scmp.lt.s32.totalorder %s20, 1
      %s240 = scalar_select %p239, %s20, 1
      %p241 = scmp.lt.s32.totalorder %s238, 31
      %s242 = scalar_select %p241, %s238, 31
      %s243 = smul.addr %s240, 32
      %s244 = sadd.s32 %s242, %s243
      %s245 = smul.addr %s244, 8
      %s246 = scalar_lea.vmem %s5, %s245
      %s247 = smul.u32 32, %s21
      %s249 = smul.u32 %s21, 16
      %s250 = smul.u32 %s249, 24
      %s251 = scalar_lea.vmem %s237, %s250
      %v252 = vld [vmem:[%s251] sm:$0xff]
      %v253 = vld [vmem:[%s251 + $0x8] sm:$0xff]
      %v254 = vld [vmem:[%s251 + $0x10] sm:$0x3]
      %v255 = vld [vmem:[%s251 + $0x18] sm:$0xff]
      %v256 = vld [vmem:[%s251 + $0x20] sm:$0xff]
      %v257 = vld [vmem:[%s251 + $0x28] sm:$0x3]
      %v258 = vld [vmem:[%s251 + $0x30] sm:$0xff]
      %v259 = vld [vmem:[%s251 + $0x38] sm:$0xff]
      %v260 = vld [vmem:[%s251 + $0x40] sm:$0x3]
      %v261 = vld [vmem:[%s251 + $0x48] sm:$0xff]
      %v262 = vld [vmem:[%s251 + $0x50] sm:$0xff]
      %v263 = vld [vmem:[%s251 + $0x58] sm:$0x3]
      %v264 = vld [vmem:[%s251 + $0x60] sm:$0xff]
      %v265 = vld [vmem:[%s251 + $0x68] sm:$0xff]
      %v266 = vld [vmem:[%s251 + $0x70] sm:$0x3]
      %v267 = vld [vmem:[%s251 + $0x78] sm:$0xff]
      %v268 = vld [vmem:[%s251 + $0x80] sm:$0xff]
      %v269 = vld [vmem:[%s251 + $0x88] sm:$0x3]
      %v270 = vld [vmem:[%s251 + $0x90] sm:$0xff]
      %v271 = vld [vmem:[%s251 + $0x98] sm:$0xff]
      %v272 = vld [vmem:[%s251 + $0xa0] sm:$0x3]
      %v273 = vld [vmem:[%s251 + $0xa8] sm:$0xff]
      %v274 = vld [vmem:[%s251 + $0xb0] sm:$0xff]
      %v275 = vld [vmem:[%s251 + $0xb8] sm:$0x3]
      %v276 = vld [vmem:[%s251 + $0xc0] sm:$0xff]
      %v277 = vld [vmem:[%s251 + $0xc8] sm:$0xff]
      %v278 = vld [vmem:[%s251 + $0xd0] sm:$0x3]
      %v279 = vld [vmem:[%s251 + $0xd8] sm:$0xff]
      %v280 = vld [vmem:[%s251 + $0xe0] sm:$0xff]
      %v281 = vld [vmem:[%s251 + $0xe8] sm:$0x3]
      %v282 = vld [vmem:[%s251 + $0xf0] sm:$0xff]
      %v283 = vld [vmem:[%s251 + $0xf8] sm:$0xff]
      %v284 = vld [vmem:[%s251 + $0x100] sm:$0x3]
      %v285 = vld [vmem:[%s251 + $0x108] sm:$0xff]
      %v286 = vld [vmem:[%s251 + $0x110] sm:$0xff]
      %v287 = vld [vmem:[%s251 + $0x118] sm:$0x3]
      %v288 = vld [vmem:[%s251 + $0x120] sm:$0xff]
      %v289 = vld [vmem:[%s251 + $0x128] sm:$0xff]
      %v290 = vld [vmem:[%s251 + $0x130] sm:$0x3]
      %v291 = vld [vmem:[%s251 + $0x138] sm:$0xff]
      %v292 = vld [vmem:[%s251 + $0x140] sm:$0xff]
      %v293 = vld [vmem:[%s251 + $0x148] sm:$0x3]
      %v294 = vld [vmem:[%s251 + $0x150] sm:$0xff]
      %v295 = vld [vmem:[%s251 + $0x158] sm:$0xff]
      %v296 = vld [vmem:[%s251 + $0x160] sm:$0x3]
      %v297 = vld [vmem:[%s251 + $0x168] sm:$0xff]
      %v298 = vld [vmem:[%s251 + $0x170] sm:$0xff]
      %v299 = vld [vmem:[%s251 + $0x178] sm:$0x3]
      %v300 = vld [vmem:[%s251 + $0x180] sm:$0xff]
      %v301 = vld [vmem:[%s251 + $0x188] sm:$0xff]
      %v302 = vld [vmem:[%s251 + $0x190] sm:$0x3]
      %v303 = vld [vmem:[%s251 + $0x198] sm:$0xff]
      %v304 = vld [vmem:[%s251 + $0x1a0] sm:$0xff]
      %v305 = vld [vmem:[%s251 + $0x1a8] sm:$0x3]
      %v306 = vld [vmem:[%s1] sm:$0x7]
      %v307 = vld [vmem:[%s1 + $0x4] sm:$0x7]
      %v308 = vld [vmem:[%s1 + $0x8] sm:$0x7]
      %v309 = vperm.slane %v306, 0
      %v310 = vmul.f32 %v252, %v309
      %v311 = vmul.f32 %v253, %v309
      %v312 = vmul.f32 %v255, %v309
      %v313 = vmul.f32 %v256, %v309
      %v314 = vmul.f32 %v258, %v309
      %v315 = vmul.f32 %v259, %v309
      %v316 = vmul.f32 %v261, %v309
      %v317 = vmul.f32 %v262, %v309
      %v318 = vmul.f32 %v264, %v309
      %v319 = vmul.f32 %v265, %v309
      %v320 = vmul.f32 %v267, %v309
      %v321 = vmul.f32 %v268, %v309
      %v322 = vmul.f32 %v270, %v309
      %v323 = vmul.f32 %v271, %v309
      %v324 = vmul.f32 %v273, %v309
      %v325 = vmul.f32 %v274, %v309
      %v326 = vmul.f32 %v276, %v309
      %v327 = vmul.f32 %v277, %v309
      %v328 = vmul.f32 %v279, %v309
      %v329 = vmul.f32 %v280, %v309
      %v330 = vmul.f32 %v282, %v309
      %v331 = vmul.f32 %v283, %v309
      %v332 = vmul.f32 %v285, %v309
      %v333 = vmul.f32 %v286, %v309
      %v334 = vmul.f32 %v288, %v309
      %v335 = vmul.f32 %v289, %v309
      %v336 = vmul.f32 %v291, %v309
      %v337 = vmul.f32 %v292, %v309
      %v338 = vmul.f32 %v294, %v309
      %v339 = vmul.f32 %v295, %v309
      %v340 = vmul.f32 %v297, %v309
      %v341 = vmul.f32 %v298, %v309
      %v342 = vperm.slane %v307, 0
      %v343 = vmul.f32 %v255, %v342
      %v344 = vmul.f32 %v256, %v342
      %v345 = vmul.f32 %v258, %v342
      %v346 = vmul.f32 %v259, %v342
      %v347 = vmul.f32 %v261, %v342
      %v348 = vmul.f32 %v262, %v342
      %v349 = vmul.f32 %v264, %v342
      %v350 = vmul.f32 %v265, %v342
      %v351 = vmul.f32 %v267, %v342
      %v352 = vmul.f32 %v268, %v342
      %v353 = vmul.f32 %v270, %v342
      %v354 = vmul.f32 %v271, %v342
      %v355 = vmul.f32 %v273, %v342
      %v356 = vmul.f32 %v274, %v342
      %v357 = vmul.f32 %v276, %v342
      %v358 = vmul.f32 %v277, %v342
      %v359 = vmul.f32 %v279, %v342
      %v360 = vmul.f32 %v280, %v342
      %v361 = vmul.f32 %v282, %v342
      %v362 = vmul.f32 %v283, %v342
      %v363 = vmul.f32 %v285, %v342
      %v364 = vmul.f32 %v286, %v342
      %v365 = vmul.f32 %v288, %v342
      %v366 = vmul.f32 %v289, %v342
      %v367 = vmul.f32 %v291, %v342
      %v368 = vmul.f32 %v292, %v342
      %v369 = vmul.f32 %v294, %v342
      %v370 = vmul.f32 %v295, %v342
      %v371 = vmul.f32 %v297, %v342
      %v372 = vmul.f32 %v298, %v342
      %v373 = vmul.f32 %v300, %v342
      %v374 = vmul.f32 %v301, %v342
      %v375 = vadd.f32 %v310, %v343
      %v376 = vadd.f32 %v311, %v344
      %v377 = vadd.f32 %v312, %v345
      %v378 = vadd.f32 %v313, %v346
      %v379 = vadd.f32 %v314, %v347
      %v380 = vadd.f32 %v315, %v348
      %v381 = vadd.f32 %v316, %v349
      %v382 = vadd.f32 %v317, %v350
      %v383 = vadd.f32 %v318, %v351
      %v384 = vadd.f32 %v319, %v352
      %v385 = vadd.f32 %v320, %v353
      %v386 = vadd.f32 %v321, %v354
      %v387 = vadd.f32 %v322, %v355
      %v388 = vadd.f32 %v323, %v356
      %v389 = vadd.f32 %v324, %v357
      %v390 = vadd.f32 %v325, %v358
      %v391 = vadd.f32 %v326, %v359
      %v392 = vadd.f32 %v327, %v360
      %v393 = vadd.f32 %v328, %v361
      %v394 = vadd.f32 %v329, %v362
      %v395 = vadd.f32 %v330, %v363
      %v396 = vadd.f32 %v331, %v364
      %v397 = vadd.f32 %v332, %v365
      %v398 = vadd.f32 %v333, %v366
      %v399 = vadd.f32 %v334, %v367
      %v400 = vadd.f32 %v335, %v368
      %v401 = vadd.f32 %v336, %v369
      %v402 = vadd.f32 %v337, %v370
      %v403 = vadd.f32 %v338, %v371
      %v404 = vadd.f32 %v339, %v372
      %v405 = vadd.f32 %v340, %v373
      %v406 = vadd.f32 %v341, %v374
      %v407 = vperm.slane %v308, 0
      %v408 = vmul.f32 %v258, %v407
      %v409 = vmul.f32 %v259, %v407
      %v410 = vmul.f32 %v261, %v407
      %v411 = vmul.f32 %v262, %v407
      %v412 = vmul.f32 %v264, %v407
      %v413 = vmul.f32 %v265, %v407
      %v414 = vmul.f32 %v267, %v407
      %v415 = vmul.f32 %v268, %v407
      %v416 = vmul.f32 %v270, %v407
      %v417 = vmul.f32 %v271, %v407
      %v418 = vmul.f32 %v273, %v407
      %v419 = vmul.f32 %v274, %v407
      %v420 = vmul.f32 %v276, %v407
      %v421 = vmul.f32 %v277, %v407
      %v422 = vmul.f32 %v279, %v407
      %v423 = vmul.f32 %v280, %v407
      %v424 = vmul.f32 %v282, %v407
      %v425 = vmul.f32 %v283, %v407
      %v426 = vmul.f32 %v285, %v407
      %v427 = vmul.f32 %v286, %v407
      %v428 = vmul.f32 %v288, %v407
      %v429 = vmul.f32 %v289, %v407
      %v430 = vmul.f32 %v291, %v407
      %v431 = vmul.f32 %v292, %v407
      %v432 = vmul.f32 %v294, %v407
      %v433 = vmul.f32 %v295, %v407
      %v434 = vmul.f32 %v297, %v407
      %v435 = vmul.f32 %v298, %v407
      %v436 = vmul.f32 %v300, %v407
      %v437 = vmul.f32 %v301, %v407
      %v438 = vmul.f32 %v303, %v407
      %v439 = vmul.f32 %v304, %v407
      %v440 = vadd.f32 %v375, %v408
      %v441 = vadd.f32 %v376, %v409
      %v442 = vadd.f32 %v377, %v410
      %v443 = vadd.f32 %v378, %v411
      %v444 = vadd.f32 %v379, %v412
      %v445 = vadd.f32 %v380, %v413
      %v446 = vadd.f32 %v381, %v414
      %v447 = vadd.f32 %v382, %v415
      %v448 = vadd.f32 %v383, %v416
      %v449 = vadd.f32 %v384, %v417
      %v450 = vadd.f32 %v385, %v418
      %v451 = vadd.f32 %v386, %v419
      %v452 = vadd.f32 %v387, %v420
      %v453 = vadd.f32 %v388, %v421
      %v454 = vadd.f32 %v389, %v422
      %v455 = vadd.f32 %v390, %v423
      %v456 = vadd.f32 %v391, %v424
      %v457 = vadd.f32 %v392, %v425
      %v458 = vadd.f32 %v393, %v426
      %v459 = vadd.f32 %v394, %v427
      %v460 = vadd.f32 %v395, %v428
      %v461 = vadd.f32 %v396, %v429
      %v462 = vadd.f32 %v397, %v430
      %v463 = vadd.f32 %v398, %v431
      %v464 = vadd.f32 %v399, %v432
      %v465 = vadd.f32 %v400, %v433
      %v466 = vadd.f32 %v401, %v434
      %v467 = vadd.f32 %v402, %v435
      %v468 = vadd.f32 %v403, %v436
      %v469 = vadd.f32 %v404, %v437
      %v470 = vadd.f32 %v405, %v438
      %v471 = vadd.f32 %v406, %v439
      %v472 = vperm.slane %v306, 1
      %v473 = vmul.f32 %v252, %v472
      %v474 = vmul.f32 %v253, %v472
      %v475 = vmul.f32 %v254, %v472
      %v476 = vmul.f32 %v255, %v472
      %v477 = vmul.f32 %v256, %v472
      %v478 = vmul.f32 %v257, %v472
      %v479 = vmul.f32 %v258, %v472
      %v480 = vmul.f32 %v259, %v472
      %v481 = vmul.f32 %v260, %v472
      %v482 = vmul.f32 %v261, %v472
      %v483 = vmul.f32 %v262, %v472
      %v484 = vmul.f32 %v263, %v472
      %v485 = vmul.f32 %v264, %v472
      %v486 = vmul.f32 %v265, %v472
      %v487 = vmul.f32 %v266, %v472
      %v488 = vmul.f32 %v267, %v472
      %v489 = vmul.f32 %v268, %v472
      %v490 = vmul.f32 %v269, %v472
      %v491 = vmul.f32 %v270, %v472
      %v492 = vmul.f32 %v271, %v472
      %v493 = vmul.f32 %v272, %v472
      %v494 = vmul.f32 %v273, %v472
      %v495 = vmul.f32 %v274, %v472
      %v496 = vmul.f32 %v275, %v472
      %v497 = vmul.f32 %v276, %v472
      %v498 = vmul.f32 %v277, %v472
      %v499 = vmul.f32 %v278, %v472
      %v500 = vmul.f32 %v279, %v472
      %v501 = vmul.f32 %v280, %v472
      %v502 = vmul.f32 %v281, %v472
      %v503 = vmul.f32 %v282, %v472
      %v504 = vmul.f32 %v283, %v472
      %v505 = vmul.f32 %v284, %v472
      %v506 = vmul.f32 %v285, %v472
      %v507 = vmul.f32 %v286, %v472
      %v508 = vmul.f32 %v287, %v472
      %v509 = vmul.f32 %v288, %v472
      %v510 = vmul.f32 %v289, %v472
      %v511 = vmul.f32 %v290, %v472
      %v512 = vmul.f32 %v291, %v472
      %v513 = vmul.f32 %v292, %v472
      %v514 = vmul.f32 %v293, %v472
      %v515 = vmul.f32 %v294, %v472
      %v516 = vmul.f32 %v295, %v472
      %v517 = vmul.f32 %v296, %v472
      %v518 = vmul.f32 %v297, %v472
      %v519 = vmul.f32 %v298, %v472
      %v520 = vmul.f32 %v299, %v472
      %vm569 = vcmask 1046528
      %v570 = vrot.slane %v473, 1
      %v571 = vrot.slane %v474, 1
      %v572 = vsel %vm569, %v570, %v571
      %v573 = vrot.slane %v475, 1
      %v574 = vsel %vm569, %v571, %v573
      %v575 = vrot.slane %v476, 1
      %v576 = vrot.slane %v477, 1
      %v577 = vsel %vm569, %v575, %v576
      %v578 = vrot.slane %v478, 1
      %v579 = vsel %vm569, %v576, %v578
      %v580 = vrot.slane %v479, 1
      %v581 = vrot.slane %v480, 1
      %v582 = vsel %vm569, %v580, %v581
      %v583 = vrot.slane %v481, 1
      %v584 = vsel %vm569, %v581, %v583
      %v585 = vrot.slane %v482, 1
      %v586 = vrot.slane %v483, 1
      %v587 = vsel %vm569, %v585, %v586
      %v588 = vrot.slane %v484, 1
      %v589 = vsel %vm569, %v586, %v588
      %v590 = vrot.slane %v485, 1
      %v591 = vrot.slane %v486, 1
      %v592 = vsel %vm569, %v590, %v591
      %v593 = vrot.slane %v487, 1
      %v594 = vsel %vm569, %v591, %v593
      %v595 = vrot.slane %v488, 1
      %v596 = vrot.slane %v489, 1
      %v597 = vsel %vm569, %v595, %v596
      %v598 = vrot.slane %v490, 1
      %v599 = vsel %vm569, %v596, %v598
      %v600 = vrot.slane %v491, 1
      %v601 = vrot.slane %v492, 1
      %v602 = vsel %vm569, %v600, %v601
      %v603 = vrot.slane %v493, 1
      %v604 = vsel %vm569, %v601, %v603
      %v605 = vrot.slane %v494, 1
      %v606 = vrot.slane %v495, 1
      %v607 = vsel %vm569, %v605, %v606
      %v608 = vrot.slane %v496, 1
      %v609 = vsel %vm569, %v606, %v608
      %v610 = vrot.slane %v497, 1
      %v611 = vrot.slane %v498, 1
      %v612 = vsel %vm569, %v610, %v611
      %v613 = vrot.slane %v499, 1
      %v614 = vsel %vm569, %v611, %v613
      %v615 = vrot.slane %v500, 1
      %v616 = vrot.slane %v501, 1
      %v617 = vsel %vm569, %v615, %v616
      %v618 = vrot.slane %v502, 1
      %v619 = vsel %vm569, %v616, %v618
      %v620 = vrot.slane %v503, 1
      %v621 = vrot.slane %v504, 1
      %v622 = vsel %vm569, %v620, %v621
      %v623 = vrot.slane %v505, 1
      %v624 = vsel %vm569, %v621, %v623
      %v625 = vrot.slane %v506, 1
      %v626 = vrot.slane %v507, 1
      %v627 = vsel %vm569, %v625, %v626
      %v628 = vrot.slane %v508, 1
      %v629 = vsel %vm569, %v626, %v628
      %v630 = vrot.slane %v509, 1
      %v631 = vrot.slane %v510, 1
      %v632 = vsel %vm569, %v630, %v631
      %v633 = vrot.slane %v511, 1
      %v634 = vsel %vm569, %v631, %v633
      %v635 = vrot.slane %v512, 1
      %v636 = vrot.slane %v513, 1
      %v637 = vsel %vm569, %v635, %v636
      %v638 = vrot.slane %v514, 1
      %v639 = vsel %vm569, %v636, %v638
      %v640 = vrot.slane %v515, 1
      %v641 = vrot.slane %v516, 1
      %v642 = vsel %vm569, %v640, %v641
      %v643 = vrot.slane %v517, 1
      %v644 = vsel %vm569, %v641, %v643
      %v645 = vrot.slane %v518, 1
      %v646 = vrot.slane %v519, 1
      %v647 = vsel %vm569, %v645, %v646
      %v648 = vrot.slane %v520, 1
      %v649 = vsel %vm569, %v646, %v648
      %v682 = vadd.f32 %v440, %v572
      %v683 = vadd.f32 %v441, %v574
      %v684 = vadd.f32 %v442, %v577
      %v685 = vadd.f32 %v443, %v579
      %v686 = vadd.f32 %v444, %v582
      %v687 = vadd.f32 %v445, %v584
      %v688 = vadd.f32 %v446, %v587
      %v689 = vadd.f32 %v447, %v589
      %v690 = vadd.f32 %v448, %v592
      %v691 = vadd.f32 %v449, %v594
      %v692 = vadd.f32 %v450, %v597
      %v693 = vadd.f32 %v451, %v599
      %v694 = vadd.f32 %v452, %v602
      %v695 = vadd.f32 %v453, %v604
      %v696 = vadd.f32 %v454, %v607
      %v697 = vadd.f32 %v455, %v609
      %v698 = vadd.f32 %v456, %v612
      %v699 = vadd.f32 %v457, %v614
      %v700 = vadd.f32 %v458, %v617
      %v701 = vadd.f32 %v459, %v619
      %v702 = vadd.f32 %v460, %v622
      %v703 = vadd.f32 %v461, %v624
      %v704 = vadd.f32 %v462, %v627
      %v705 = vadd.f32 %v463, %v629
      %v706 = vadd.f32 %v464, %v632
      %v707 = vadd.f32 %v465, %v634
      %v708 = vadd.f32 %v466, %v637
      %v709 = vadd.f32 %v467, %v639
      %v710 = vadd.f32 %v468, %v642
      %v711 = vadd.f32 %v469, %v644
      %v712 = vadd.f32 %v470, %v647
      %v713 = vadd.f32 %v471, %v649
      %v714 = vperm.slane %v307, 1
      %v715 = vmul.f32 %v255, %v714
      %v716 = vmul.f32 %v256, %v714
      %v717 = vmul.f32 %v257, %v714
      %v718 = vmul.f32 %v258, %v714
      %v719 = vmul.f32 %v259, %v714
      %v720 = vmul.f32 %v260, %v714
      %v721 = vmul.f32 %v261, %v714
      %v722 = vmul.f32 %v262, %v714
      %v723 = vmul.f32 %v263, %v714
      %v724 = vmul.f32 %v264, %v714
      %v725 = vmul.f32 %v265, %v714
      %v726 = vmul.f32 %v266, %v714
      %v727 = vmul.f32 %v267, %v714
      %v728 = vmul.f32 %v268, %v714
      %v729 = vmul.f32 %v269, %v714
      %v730 = vmul.f32 %v270, %v714
      %v731 = vmul.f32 %v271, %v714
      %v732 = vmul.f32 %v272, %v714
      %v733 = vmul.f32 %v273, %v714
      %v734 = vmul.f32 %v274, %v714
      %v735 = vmul.f32 %v275, %v714
      %v736 = vmul.f32 %v276, %v714
      %v737 = vmul.f32 %v277, %v714
      %v738 = vmul.f32 %v278, %v714
      %v739 = vmul.f32 %v279, %v714
      %v740 = vmul.f32 %v280, %v714
      %v741 = vmul.f32 %v281, %v714
      %v742 = vmul.f32 %v282, %v714
      %v743 = vmul.f32 %v283, %v714
      %v744 = vmul.f32 %v284, %v714
      %v745 = vmul.f32 %v285, %v714
      %v746 = vmul.f32 %v286, %v714
      %v747 = vmul.f32 %v287, %v714
      %v748 = vmul.f32 %v288, %v714
      %v749 = vmul.f32 %v289, %v714
      %v750 = vmul.f32 %v290, %v714
      %v751 = vmul.f32 %v291, %v714
      %v752 = vmul.f32 %v292, %v714
      %v753 = vmul.f32 %v293, %v714
      %v754 = vmul.f32 %v294, %v714
      %v755 = vmul.f32 %v295, %v714
      %v756 = vmul.f32 %v296, %v714
      %v757 = vmul.f32 %v297, %v714
      %v758 = vmul.f32 %v298, %v714
      %v759 = vmul.f32 %v299, %v714
      %v760 = vmul.f32 %v300, %v714
      %v761 = vmul.f32 %v301, %v714
      %v762 = vmul.f32 %v302, %v714
      %v811 = vrot.slane %v715, 1
      %v812 = vrot.slane %v716, 1
      %v813 = vsel %vm569, %v811, %v812
      %v814 = vrot.slane %v717, 1
      %v815 = vsel %vm569, %v812, %v814
      %v816 = vrot.slane %v718, 1
      %v817 = vrot.slane %v719, 1
      %v818 = vsel %vm569, %v816, %v817
      %v819 = vrot.slane %v720, 1
      %v820 = vsel %vm569, %v817, %v819
      %v821 = vrot.slane %v721, 1
      %v822 = vrot.slane %v722, 1
      %v823 = vsel %vm569, %v821, %v822
      %v824 = vrot.slane %v723, 1
      %v825 = vsel %vm569, %v822, %v824
      %v826 = vrot.slane %v724, 1
      %v827 = vrot.slane %v725, 1
      %v828 = vsel %vm569, %v826, %v827
      %v829 = vrot.slane %v726, 1
      %v830 = vsel %vm569, %v827, %v829
      %v831 = vrot.slane %v727, 1
      %v832 = vrot.slane %v728, 1
      %v833 = vsel %vm569, %v831, %v832
      %v834 = vrot.slane %v729, 1
      %v835 = vsel %vm569, %v832, %v834
      %v836 = vrot.slane %v730, 1
      %v837 = vrot.slane %v731, 1
      %v838 = vsel %vm569, %v836, %v837
      %v839 = vrot.slane %v732, 1
      %v840 = vsel %vm569, %v837, %v839
      %v841 = vrot.slane %v733, 1
      %v842 = vrot.slane %v734, 1
      %v843 = vsel %vm569, %v841, %v842
      %v844 = vrot.slane %v735, 1
      %v845 = vsel %vm569, %v842, %v844
      %v846 = vrot.slane %v736, 1
      %v847 = vrot.slane %v737, 1
      %v848 = vsel %vm569, %v846, %v847
      %v849 = vrot.slane %v738, 1
      %v850 = vsel %vm569, %v847, %v849
      %v851 = vrot.slane %v739, 1
      %v852 = vrot.slane %v740, 1
      %v853 = vsel %vm569, %v851, %v852
      %v854 = vrot.slane %v741, 1
      %v855 = vsel %vm569, %v852, %v854
      %v856 = vrot.slane %v742, 1
      %v857 = vrot.slane %v743, 1
      %v858 = vsel %vm569, %v856, %v857
      %v859 = vrot.slane %v744, 1
      %v860 = vsel %vm569, %v857, %v859
      %v861 = vrot.slane %v745, 1
      %v862 = vrot.slane %v746, 1
      %v863 = vsel %vm569, %v861, %v862
      %v864 = vrot.slane %v747, 1
      %v865 = vsel %vm569, %v862, %v864
      %v866 = vrot.slane %v748, 1
      %v867 = vrot.slane %v749, 1
      %v868 = vsel %vm569, %v866, %v867
      %v869 = vrot.slane %v750, 1
      %v870 = vsel %vm569, %v867, %v869
      %v871 = vrot.slane %v751, 1
      %v872 = vrot.slane %v752, 1
      %v873 = vsel %vm569, %v871, %v872
      %v874 = vrot.slane %v753, 1
      %v875 = vsel %vm569, %v872, %v874
      %v876 = vrot.slane %v754, 1
      %v877 = vrot.slane %v755, 1
      %v878 = vsel %vm569, %v876, %v877
      %v879 = vrot.slane %v756, 1
      %v880 = vsel %vm569, %v877, %v879
      %v881 = vrot.slane %v757, 1
      %v882 = vrot.slane %v758, 1
      %v883 = vsel %vm569, %v881, %v882
      %v884 = vrot.slane %v759, 1
      %v885 = vsel %vm569, %v882, %v884
      %v886 = vrot.slane %v760, 1
      %v887 = vrot.slane %v761, 1
      %v888 = vsel %vm569, %v886, %v887
      %v889 = vrot.slane %v762, 1
      %v890 = vsel %vm569, %v887, %v889
      %v923 = vadd.f32 %v682, %v813
      %v924 = vadd.f32 %v683, %v815
      %v925 = vadd.f32 %v684, %v818
      %v926 = vadd.f32 %v685, %v820
      %v927 = vadd.f32 %v686, %v823
      %v928 = vadd.f32 %v687, %v825
      %v929 = vadd.f32 %v688, %v828
      %v930 = vadd.f32 %v689, %v830
      %v931 = vadd.f32 %v690, %v833
      %v932 = vadd.f32 %v691, %v835
      %v933 = vadd.f32 %v692, %v838
      %v934 = vadd.f32 %v693, %v840
      %v935 = vadd.f32 %v694, %v843
      %v936 = vadd.f32 %v695, %v845
      %v937 = vadd.f32 %v696, %v848
      %v938 = vadd.f32 %v697, %v850
      %v939 = vadd.f32 %v698, %v853
      %v940 = vadd.f32 %v699, %v855
      %v941 = vadd.f32 %v700, %v858
      %v942 = vadd.f32 %v701, %v860
      %v943 = vadd.f32 %v702, %v863
      %v944 = vadd.f32 %v703, %v865
      %v945 = vadd.f32 %v704, %v868
      %v946 = vadd.f32 %v705, %v870
      %v947 = vadd.f32 %v706, %v873
      %v948 = vadd.f32 %v707, %v875
      %v949 = vadd.f32 %v708, %v878
      %v950 = vadd.f32 %v709, %v880
      %v951 = vadd.f32 %v710, %v883
      %v952 = vadd.f32 %v711, %v885
      %v953 = vadd.f32 %v712, %v888
      %v954 = vadd.f32 %v713, %v890
      %v955 = vperm.slane %v308, 1
      %v956 = vmul.f32 %v258, %v955
      %v957 = vmul.f32 %v259, %v955
      %v958 = vmul.f32 %v260, %v955
      %v959 = vmul.f32 %v261, %v955
      %v960 = vmul.f32 %v262, %v955
      %v961 = vmul.f32 %v263, %v955
      %v962 = vmul.f32 %v264, %v955
      %v963 = vmul.f32 %v265, %v955
      %v964 = vmul.f32 %v266, %v955
      %v965 = vmul.f32 %v267, %v955
      %v966 = vmul.f32 %v268, %v955
      %v967 = vmul.f32 %v269, %v955
      %v968 = vmul.f32 %v270, %v955
      %v969 = vmul.f32 %v271, %v955
      %v970 = vmul.f32 %v272, %v955
      %v971 = vmul.f32 %v273, %v955
      %v972 = vmul.f32 %v274, %v955
      %v973 = vmul.f32 %v275, %v955
      %v974 = vmul.f32 %v276, %v955
      %v975 = vmul.f32 %v277, %v955
      %v976 = vmul.f32 %v278, %v955
      %v977 = vmul.f32 %v279, %v955
      %v978 = vmul.f32 %v280, %v955
      %v979 = vmul.f32 %v281, %v955
      %v980 = vmul.f32 %v282, %v955
      %v981 = vmul.f32 %v283, %v955
      %v982 = vmul.f32 %v284, %v955
      %v983 = vmul.f32 %v285, %v955
      %v984 = vmul.f32 %v286, %v955
      %v985 = vmul.f32 %v287, %v955
      %v986 = vmul.f32 %v288, %v955
      %v987 = vmul.f32 %v289, %v955
      %v988 = vmul.f32 %v290, %v955
      %v989 = vmul.f32 %v291, %v955
      %v990 = vmul.f32 %v292, %v955
      %v991 = vmul.f32 %v293, %v955
      %v992 = vmul.f32 %v294, %v955
      %v993 = vmul.f32 %v295, %v955
      %v994 = vmul.f32 %v296, %v955
      %v995 = vmul.f32 %v297, %v955
      %v996 = vmul.f32 %v298, %v955
      %v997 = vmul.f32 %v299, %v955
      %v998 = vmul.f32 %v300, %v955
      %v999 = vmul.f32 %v301, %v955
      %v1000 = vmul.f32 %v302, %v955
      %v1001 = vmul.f32 %v303, %v955
      %v1002 = vmul.f32 %v304, %v955
      %v1003 = vmul.f32 %v305, %v955
      %v1052 = vrot.slane %v956, 1
      %v1053 = vrot.slane %v957, 1
      %v1054 = vsel %vm569, %v1052, %v1053
      %v1055 = vrot.slane %v958, 1
      %v1056 = vsel %vm569, %v1053, %v1055
      %v1057 = vrot.slane %v959, 1
      %v1058 = vrot.slane %v960, 1
      %v1059 = vsel %vm569, %v1057, %v1058
      %v1060 = vrot.slane %v961, 1
      %v1061 = vsel %vm569, %v1058, %v1060
      %v1062 = vrot.slane %v962, 1
      %v1063 = vrot.slane %v963, 1
      %v1064 = vsel %vm569, %v1062, %v1063
      %v1065 = vrot.slane %v964, 1
      %v1066 = vsel %vm569, %v1063, %v1065
      %v1067 = vrot.slane %v965, 1
      %v1068 = vrot.slane %v966, 1
      %v1069 = vsel %vm569, %v1067, %v1068
      %v1070 = vrot.slane %v967, 1
      %v1071 = vsel %vm569, %v1068, %v1070
      %v1072 = vrot.slane %v968, 1
      %v1073 = vrot.slane %v969, 1
      %v1074 = vsel %vm569, %v1072, %v1073
      %v1075 = vrot.slane %v970, 1
      %v1076 = vsel %vm569, %v1073, %v1075
      %v1077 = vrot.slane %v971, 1
      %v1078 = vrot.slane %v972, 1
      %v1079 = vsel %vm569, %v1077, %v1078
      %v1080 = vrot.slane %v973, 1
      %v1081 = vsel %vm569, %v1078, %v1080
      %v1082 = vrot.slane %v974, 1
      %v1083 = vrot.slane %v975, 1
      %v1084 = vsel %vm569, %v1082, %v1083
      %v1085 = vrot.slane %v976, 1
      %v1086 = vsel %vm569, %v1083, %v1085
      %v1087 = vrot.slane %v977, 1
      %v1088 = vrot.slane %v978, 1
      %v1089 = vsel %vm569, %v1087, %v1088
      %v1090 = vrot.slane %v979, 1
      %v1091 = vsel %vm569, %v1088, %v1090
      %v1092 = vrot.slane %v980, 1
      %v1093 = vrot.slane %v981, 1
      %v1094 = vsel %vm569, %v1092, %v1093
      %v1095 = vrot.slane %v982, 1
      %v1096 = vsel %vm569, %v1093, %v1095
      %v1097 = vrot.slane %v983, 1
      %v1098 = vrot.slane %v984, 1
      %v1099 = vsel %vm569, %v1097, %v1098
      %v1100 = vrot.slane %v985, 1
      %v1101 = vsel %vm569, %v1098, %v1100
      %v1102 = vrot.slane %v986, 1
      %v1103 = vrot.slane %v987, 1
      %v1104 = vsel %vm569, %v1102, %v1103
      %v1105 = vrot.slane %v988, 1
      %v1106 = vsel %vm569, %v1103, %v1105
      %v1107 = vrot.slane %v989, 1
      %v1108 = vrot.slane %v990, 1
      %v1109 = vsel %vm569, %v1107, %v1108
      %v1110 = vrot.slane %v991, 1
      %v1111 = vsel %vm569, %v1108, %v1110
      %v1112 = vrot.slane %v992, 1
      %v1113 = vrot.slane %v993, 1
      %v1114 = vsel %vm569, %v1112, %v1113
      %v1115 = vrot.slane %v994, 1
      %v1116 = vsel %vm569, %v1113, %v1115
      %v1117 = vrot.slane %v995, 1
      %v1118 = vrot.slane %v996, 1
      %v1119 = vsel %vm569, %v1117, %v1118
      %v1120 = vrot.slane %v997, 1
      %v1121 = vsel %vm569, %v1118, %v1120
      %v1122 = vrot.slane %v998, 1
      %v1123 = vrot.slane %v999, 1
      %v1124 = vsel %vm569, %v1122, %v1123
      %v1125 = vrot.slane %v1000, 1
      %v1126 = vsel %vm569, %v1123, %v1125
      %v1127 = vrot.slane %v1001, 1
      %v1128 = vrot.slane %v1002, 1
      %v1129 = vsel %vm569, %v1127, %v1128
      %v1130 = vrot.slane %v1003, 1
      %v1131 = vsel %vm569, %v1128, %v1130
      %v1164 = vadd.f32 %v923, %v1054
      %v1165 = vadd.f32 %v924, %v1056
      %v1166 = vadd.f32 %v925, %v1059
      %v1167 = vadd.f32 %v926, %v1061
      %v1168 = vadd.f32 %v927, %v1064
      %v1169 = vadd.f32 %v928, %v1066
      %v1170 = vadd.f32 %v929, %v1069
      %v1171 = vadd.f32 %v930, %v1071
      %v1172 = vadd.f32 %v931, %v1074
      %v1173 = vadd.f32 %v932, %v1076
      %v1174 = vadd.f32 %v933, %v1079
      %v1175 = vadd.f32 %v934, %v1081
      %v1176 = vadd.f32 %v935, %v1084
      %v1177 = vadd.f32 %v936, %v1086
      %v1178 = vadd.f32 %v937, %v1089
      %v1179 = vadd.f32 %v938, %v1091
      %v1180 = vadd.f32 %v939, %v1094
      %v1181 = vadd.f32 %v940, %v1096
      %v1182 = vadd.f32 %v941, %v1099
      %v1183 = vadd.f32 %v942, %v1101
      %v1184 = vadd.f32 %v943, %v1104
      %v1185 = vadd.f32 %v944, %v1106
      %v1186 = vadd.f32 %v945, %v1109
      %v1187 = vadd.f32 %v946, %v1111
      %v1188 = vadd.f32 %v947, %v1114
      %v1189 = vadd.f32 %v948, %v1116
      %v1190 = vadd.f32 %v949, %v1119
      %v1191 = vadd.f32 %v950, %v1121
      %v1192 = vadd.f32 %v951, %v1124
      %v1193 = vadd.f32 %v952, %v1126
      %v1194 = vadd.f32 %v953, %v1129
      %v1195 = vadd.f32 %v954, %v1131
      %v1196 = vperm.slane %v306, 2
      %v1197 = vmul.f32 %v252, %v1196
      %v1198 = vmul.f32 %v253, %v1196
      %v1199 = vmul.f32 %v254, %v1196
      %v1200 = vmul.f32 %v255, %v1196
      %v1201 = vmul.f32 %v256, %v1196
      %v1202 = vmul.f32 %v257, %v1196
      %v1203 = vmul.f32 %v258, %v1196
      %v1204 = vmul.f32 %v259, %v1196
      %v1205 = vmul.f32 %v260, %v1196
      %v1206 = vmul.f32 %v261, %v1196
      %v1207 = vmul.f32 %v262, %v1196
      %v1208 = vmul.f32 %v263, %v1196
      %v1209 = vmul.f32 %v264, %v1196
      %v1210 = vmul.f32 %v265, %v1196
      %v1211 = vmul.f32 %v266, %v1196
      %v1212 = vmul.f32 %v267, %v1196
      %v1213 = vmul.f32 %v268, %v1196
      %v1214 = vmul.f32 %v269, %v1196
      %v1215 = vmul.f32 %v270, %v1196
      %v1216 = vmul.f32 %v271, %v1196
      %v1217 = vmul.f32 %v272, %v1196
      %v1218 = vmul.f32 %v273, %v1196
      %v1219 = vmul.f32 %v274, %v1196
      %v1220 = vmul.f32 %v275, %v1196
      %v1221 = vmul.f32 %v276, %v1196
      %v1222 = vmul.f32 %v277, %v1196
      %v1223 = vmul.f32 %v278, %v1196
      %v1224 = vmul.f32 %v279, %v1196
      %v1225 = vmul.f32 %v280, %v1196
      %v1226 = vmul.f32 %v281, %v1196
      %v1227 = vmul.f32 %v282, %v1196
      %v1228 = vmul.f32 %v283, %v1196
      %v1229 = vmul.f32 %v284, %v1196
      %v1230 = vmul.f32 %v285, %v1196
      %v1231 = vmul.f32 %v286, %v1196
      %v1232 = vmul.f32 %v287, %v1196
      %v1233 = vmul.f32 %v288, %v1196
      %v1234 = vmul.f32 %v289, %v1196
      %v1235 = vmul.f32 %v290, %v1196
      %v1236 = vmul.f32 %v291, %v1196
      %v1237 = vmul.f32 %v292, %v1196
      %v1238 = vmul.f32 %v293, %v1196
      %v1239 = vmul.f32 %v294, %v1196
      %v1240 = vmul.f32 %v295, %v1196
      %v1241 = vmul.f32 %v296, %v1196
      %v1242 = vmul.f32 %v297, %v1196
      %v1243 = vmul.f32 %v298, %v1196
      %v1244 = vmul.f32 %v299, %v1196
      %vm1293 = vcmask 1045504
      %v1294 = vrot.slane %v1197, 2
      %v1295 = vrot.slane %v1198, 2
      %v1296 = vsel %vm1293, %v1294, %v1295
      %v1297 = vrot.slane %v1199, 2
      %v1298 = vsel %vm1293, %v1295, %v1297
      %v1299 = vrot.slane %v1200, 2
      %v1300 = vrot.slane %v1201, 2
      %v1301 = vsel %vm1293, %v1299, %v1300
      %v1302 = vrot.slane %v1202, 2
      %v1303 = vsel %vm1293, %v1300, %v1302
      %v1304 = vrot.slane %v1203, 2
      %v1305 = vrot.slane %v1204, 2
      %v1306 = vsel %vm1293, %v1304, %v1305
      %v1307 = vrot.slane %v1205, 2
      %v1308 = vsel %vm1293, %v1305, %v1307
      %v1309 = vrot.slane %v1206, 2
      %v1310 = vrot.slane %v1207, 2
      %v1311 = vsel %vm1293, %v1309, %v1310
      %v1312 = vrot.slane %v1208, 2
      %v1313 = vsel %vm1293, %v1310, %v1312
      %v1314 = vrot.slane %v1209, 2
      %v1315 = vrot.slane %v1210, 2
      %v1316 = vsel %vm1293, %v1314, %v1315
      %v1317 = vrot.slane %v1211, 2
      %v1318 = vsel %vm1293, %v1315, %v1317
      %v1319 = vrot.slane %v1212, 2
      %v1320 = vrot.slane %v1213, 2
      %v1321 = vsel %vm1293, %v1319, %v1320
      %v1322 = vrot.slane %v1214, 2
      %v1323 = vsel %vm1293, %v1320, %v1322
      %v1324 = vrot.slane %v1215, 2
      %v1325 = vrot.slane %v1216, 2
      %v1326 = vsel %vm1293, %v1324, %v1325
      %v1327 = vrot.slane %v1217, 2
      %v1328 = vsel %vm1293, %v1325, %v1327
      %v1329 = vrot.slane %v1218, 2
      %v1330 = vrot.slane %v1219, 2
      %v1331 = vsel %vm1293, %v1329, %v1330
      %v1332 = vrot.slane %v1220, 2
      %v1333 = vsel %vm1293, %v1330, %v1332
      %v1334 = vrot.slane %v1221, 2
      %v1335 = vrot.slane %v1222, 2
      %v1336 = vsel %vm1293, %v1334, %v1335
      %v1337 = vrot.slane %v1223, 2
      %v1338 = vsel %vm1293, %v1335, %v1337
      %v1339 = vrot.slane %v1224, 2
      %v1340 = vrot.slane %v1225, 2
      %v1341 = vsel %vm1293, %v1339, %v1340
      %v1342 = vrot.slane %v1226, 2
      %v1343 = vsel %vm1293, %v1340, %v1342
      %v1344 = vrot.slane %v1227, 2
      %v1345 = vrot.slane %v1228, 2
      %v1346 = vsel %vm1293, %v1344, %v1345
      %v1347 = vrot.slane %v1229, 2
      %v1348 = vsel %vm1293, %v1345, %v1347
      %v1349 = vrot.slane %v1230, 2
      %v1350 = vrot.slane %v1231, 2
      %v1351 = vsel %vm1293, %v1349, %v1350
      %v1352 = vrot.slane %v1232, 2
      %v1353 = vsel %vm1293, %v1350, %v1352
      %v1354 = vrot.slane %v1233, 2
      %v1355 = vrot.slane %v1234, 2
      %v1356 = vsel %vm1293, %v1354, %v1355
      %v1357 = vrot.slane %v1235, 2
      %v1358 = vsel %vm1293, %v1355, %v1357
      %v1359 = vrot.slane %v1236, 2
      %v1360 = vrot.slane %v1237, 2
      %v1361 = vsel %vm1293, %v1359, %v1360
      %v1362 = vrot.slane %v1238, 2
      %v1363 = vsel %vm1293, %v1360, %v1362
      %v1364 = vrot.slane %v1239, 2
      %v1365 = vrot.slane %v1240, 2
      %v1366 = vsel %vm1293, %v1364, %v1365
      %v1367 = vrot.slane %v1241, 2
      %v1368 = vsel %vm1293, %v1365, %v1367
      %v1369 = vrot.slane %v1242, 2
      %v1370 = vrot.slane %v1243, 2
      %v1371 = vsel %vm1293, %v1369, %v1370
      %v1372 = vrot.slane %v1244, 2
      %v1373 = vsel %vm1293, %v1370, %v1372
      %v1406 = vadd.f32 %v1164, %v1296
      %v1407 = vadd.f32 %v1165, %v1298
      %v1408 = vadd.f32 %v1166, %v1301
      %v1409 = vadd.f32 %v1167, %v1303
      %v1410 = vadd.f32 %v1168, %v1306
      %v1411 = vadd.f32 %v1169, %v1308
      %v1412 = vadd.f32 %v1170, %v1311
      %v1413 = vadd.f32 %v1171, %v1313
      %v1414 = vadd.f32 %v1172, %v1316
      %v1415 = vadd.f32 %v1173, %v1318
      %v1416 = vadd.f32 %v1174, %v1321
      %v1417 = vadd.f32 %v1175, %v1323
      %v1418 = vadd.f32 %v1176, %v1326
      %v1419 = vadd.f32 %v1177, %v1328
      %v1420 = vadd.f32 %v1178, %v1331
      %v1421 = vadd.f32 %v1179, %v1333
      %v1422 = vadd.f32 %v1180, %v1336
      %v1423 = vadd.f32 %v1181, %v1338
      %v1424 = vadd.f32 %v1182, %v1341
      %v1425 = vadd.f32 %v1183, %v1343
      %v1426 = vadd.f32 %v1184, %v1346
      %v1427 = vadd.f32 %v1185, %v1348
      %v1428 = vadd.f32 %v1186, %v1351
      %v1429 = vadd.f32 %v1187, %v1353
      %v1430 = vadd.f32 %v1188, %v1356
      %v1431 = vadd.f32 %v1189, %v1358
      %v1432 = vadd.f32 %v1190, %v1361
      %v1433 = vadd.f32 %v1191, %v1363
      %v1434 = vadd.f32 %v1192, %v1366
      %v1435 = vadd.f32 %v1193, %v1368
      %v1436 = vadd.f32 %v1194, %v1371
      %v1437 = vadd.f32 %v1195, %v1373
      %v1438 = vperm.slane %v307, 2
      %v1439 = vmul.f32 %v255, %v1438
      %v1440 = vmul.f32 %v256, %v1438
      %v1441 = vmul.f32 %v257, %v1438
      %v1442 = vmul.f32 %v258, %v1438
      %v1443 = vmul.f32 %v259, %v1438
      %v1444 = vmul.f32 %v260, %v1438
      %v1445 = vmul.f32 %v261, %v1438
      %v1446 = vmul.f32 %v262, %v1438
      %v1447 = vmul.f32 %v263, %v1438
      %v1448 = vmul.f32 %v264, %v1438
      %v1449 = vmul.f32 %v265, %v1438
      %v1450 = vmul.f32 %v266, %v1438
      %v1451 = vmul.f32 %v267, %v1438
      %v1452 = vmul.f32 %v268, %v1438
      %v1453 = vmul.f32 %v269, %v1438
      %v1454 = vmul.f32 %v270, %v1438
      %v1455 = vmul.f32 %v271, %v1438
      %v1456 = vmul.f32 %v272, %v1438
      %v1457 = vmul.f32 %v273, %v1438
      %v1458 = vmul.f32 %v274, %v1438
      %v1459 = vmul.f32 %v275, %v1438
      %v1460 = vmul.f32 %v276, %v1438
      %v1461 = vmul.f32 %v277, %v1438
      %v1462 = vmul.f32 %v278, %v1438
      %v1463 = vmul.f32 %v279, %v1438
      %v1464 = vmul.f32 %v280, %v1438
      %v1465 = vmul.f32 %v281, %v1438
      %v1466 = vmul.f32 %v282, %v1438
      %v1467 = vmul.f32 %v283, %v1438
      %v1468 = vmul.f32 %v284, %v1438
      %v1469 = vmul.f32 %v285, %v1438
      %v1470 = vmul.f32 %v286, %v1438
      %v1471 = vmul.f32 %v287, %v1438
      %v1472 = vmul.f32 %v288, %v1438
      %v1473 = vmul.f32 %v289, %v1438
      %v1474 = vmul.f32 %v290, %v1438
      %v1475 = vmul.f32 %v291, %v1438
      %v1476 = vmul.f32 %v292, %v1438
      %v1477 = vmul.f32 %v293, %v1438
      %v1478 = vmul.f32 %v294, %v1438
      %v1479 = vmul.f32 %v295, %v1438
      %v1480 = vmul.f32 %v296, %v1438
      %v1481 = vmul.f32 %v297, %v1438
      %v1482 = vmul.f32 %v298, %v1438
      %v1483 = vmul.f32 %v299, %v1438
      %v1484 = vmul.f32 %v300, %v1438
      %v1485 = vmul.f32 %v301, %v1438
      %v1486 = vmul.f32 %v302, %v1438
      %v1535 = vrot.slane %v1439, 2
      %v1536 = vrot.slane %v1440, 2
      %v1537 = vsel %vm1293, %v1535, %v1536
      %v1538 = vrot.slane %v1441, 2
      %v1539 = vsel %vm1293, %v1536, %v1538
      %v1540 = vrot.slane %v1442, 2
      %v1541 = vrot.slane %v1443, 2
      %v1542 = vsel %vm1293, %v1540, %v1541
      %v1543 = vrot.slane %v1444, 2
      %v1544 = vsel %vm1293, %v1541, %v1543
      %v1545 = vrot.slane %v1445, 2
      %v1546 = vrot.slane %v1446, 2
      %v1547 = vsel %vm1293, %v1545, %v1546
      %v1548 = vrot.slane %v1447, 2
      %v1549 = vsel %vm1293, %v1546, %v1548
      %v1550 = vrot.slane %v1448, 2
      %v1551 = vrot.slane %v1449, 2
      %v1552 = vsel %vm1293, %v1550, %v1551
      %v1553 = vrot.slane %v1450, 2
      %v1554 = vsel %vm1293, %v1551, %v1553
      %v1555 = vrot.slane %v1451, 2
      %v1556 = vrot.slane %v1452, 2
      %v1557 = vsel %vm1293, %v1555, %v1556
      %v1558 = vrot.slane %v1453, 2
      %v1559 = vsel %vm1293, %v1556, %v1558
      %v1560 = vrot.slane %v1454, 2
      %v1561 = vrot.slane %v1455, 2
      %v1562 = vsel %vm1293, %v1560, %v1561
      %v1563 = vrot.slane %v1456, 2
      %v1564 = vsel %vm1293, %v1561, %v1563
      %v1565 = vrot.slane %v1457, 2
      %v1566 = vrot.slane %v1458, 2
      %v1567 = vsel %vm1293, %v1565, %v1566
      %v1568 = vrot.slane %v1459, 2
      %v1569 = vsel %vm1293, %v1566, %v1568
      %v1570 = vrot.slane %v1460, 2
      %v1571 = vrot.slane %v1461, 2
      %v1572 = vsel %vm1293, %v1570, %v1571
      %v1573 = vrot.slane %v1462, 2
      %v1574 = vsel %vm1293, %v1571, %v1573
      %v1575 = vrot.slane %v1463, 2
      %v1576 = vrot.slane %v1464, 2
      %v1577 = vsel %vm1293, %v1575, %v1576
      %v1578 = vrot.slane %v1465, 2
      %v1579 = vsel %vm1293, %v1576, %v1578
      %v1580 = vrot.slane %v1466, 2
      %v1581 = vrot.slane %v1467, 2
      %v1582 = vsel %vm1293, %v1580, %v1581
      %v1583 = vrot.slane %v1468, 2
      %v1584 = vsel %vm1293, %v1581, %v1583
      %v1585 = vrot.slane %v1469, 2
      %v1586 = vrot.slane %v1470, 2
      %v1587 = vsel %vm1293, %v1585, %v1586
      %v1588 = vrot.slane %v1471, 2
      %v1589 = vsel %vm1293, %v1586, %v1588
      %v1590 = vrot.slane %v1472, 2
      %v1591 = vrot.slane %v1473, 2
      %v1592 = vsel %vm1293, %v1590, %v1591
      %v1593 = vrot.slane %v1474, 2
      %v1594 = vsel %vm1293, %v1591, %v1593
      %v1595 = vrot.slane %v1475, 2
      %v1596 = vrot.slane %v1476, 2
      %v1597 = vsel %vm1293, %v1595, %v1596
      %v1598 = vrot.slane %v1477, 2
      %v1599 = vsel %vm1293, %v1596, %v1598
      %v1600 = vrot.slane %v1478, 2
      %v1601 = vrot.slane %v1479, 2
      %v1602 = vsel %vm1293, %v1600, %v1601
      %v1603 = vrot.slane %v1480, 2
      %v1604 = vsel %vm1293, %v1601, %v1603
      %v1605 = vrot.slane %v1481, 2
      %v1606 = vrot.slane %v1482, 2
      %v1607 = vsel %vm1293, %v1605, %v1606
      %v1608 = vrot.slane %v1483, 2
      %v1609 = vsel %vm1293, %v1606, %v1608
      %v1610 = vrot.slane %v1484, 2
      %v1611 = vrot.slane %v1485, 2
      %v1612 = vsel %vm1293, %v1610, %v1611
      %v1613 = vrot.slane %v1486, 2
      %v1614 = vsel %vm1293, %v1611, %v1613
      %v1647 = vadd.f32 %v1406, %v1537
      %v1648 = vadd.f32 %v1407, %v1539
      %v1649 = vadd.f32 %v1408, %v1542
      %v1650 = vadd.f32 %v1409, %v1544
      %v1651 = vadd.f32 %v1410, %v1547
      %v1652 = vadd.f32 %v1411, %v1549
      %v1653 = vadd.f32 %v1412, %v1552
      %v1654 = vadd.f32 %v1413, %v1554
      %v1655 = vadd.f32 %v1414, %v1557
      %v1656 = vadd.f32 %v1415, %v1559
      %v1657 = vadd.f32 %v1416, %v1562
      %v1658 = vadd.f32 %v1417, %v1564
      %v1659 = vadd.f32 %v1418, %v1567
      %v1660 = vadd.f32 %v1419, %v1569
      %v1661 = vadd.f32 %v1420, %v1572
      %v1662 = vadd.f32 %v1421, %v1574
      %v1663 = vadd.f32 %v1422, %v1577
      %v1664 = vadd.f32 %v1423, %v1579
      %v1665 = vadd.f32 %v1424, %v1582
      %v1666 = vadd.f32 %v1425, %v1584
      %v1667 = vadd.f32 %v1426, %v1587
      %v1668 = vadd.f32 %v1427, %v1589
      %v1669 = vadd.f32 %v1428, %v1592
      %v1670 = vadd.f32 %v1429, %v1594
      %v1671 = vadd.f32 %v1430, %v1597
      %v1672 = vadd.f32 %v1431, %v1599
      %v1673 = vadd.f32 %v1432, %v1602
      %v1674 = vadd.f32 %v1433, %v1604
      %v1675 = vadd.f32 %v1434, %v1607
      %v1676 = vadd.f32 %v1435, %v1609
      %v1677 = vadd.f32 %v1436, %v1612
      %v1678 = vadd.f32 %v1437, %v1614
      %v1679 = vperm.slane %v308, 2
      %v1680 = vmul.f32 %v258, %v1679
      %v1681 = vmul.f32 %v259, %v1679
      %v1682 = vmul.f32 %v260, %v1679
      %v1683 = vmul.f32 %v261, %v1679
      %v1684 = vmul.f32 %v262, %v1679
      %v1685 = vmul.f32 %v263, %v1679
      %v1686 = vmul.f32 %v264, %v1679
      %v1687 = vmul.f32 %v265, %v1679
      %v1688 = vmul.f32 %v266, %v1679
      %v1689 = vmul.f32 %v267, %v1679
      %v1690 = vmul.f32 %v268, %v1679
      %v1691 = vmul.f32 %v269, %v1679
      %v1692 = vmul.f32 %v270, %v1679
      %v1693 = vmul.f32 %v271, %v1679
      %v1694 = vmul.f32 %v272, %v1679
      %v1695 = vmul.f32 %v273, %v1679
      %v1696 = vmul.f32 %v274, %v1679
      %v1697 = vmul.f32 %v275, %v1679
      %v1698 = vmul.f32 %v276, %v1679
      %v1699 = vmul.f32 %v277, %v1679
      %v1700 = vmul.f32 %v278, %v1679
      %v1701 = vmul.f32 %v279, %v1679
      %v1702 = vmul.f32 %v280, %v1679
      %v1703 = vmul.f32 %v281, %v1679
      %v1704 = vmul.f32 %v282, %v1679
      %v1705 = vmul.f32 %v283, %v1679
      %v1706 = vmul.f32 %v284, %v1679
      %v1707 = vmul.f32 %v285, %v1679
      %v1708 = vmul.f32 %v286, %v1679
      %v1709 = vmul.f32 %v287, %v1679
      %v1710 = vmul.f32 %v288, %v1679
      %v1711 = vmul.f32 %v289, %v1679
      %v1712 = vmul.f32 %v290, %v1679
      %v1713 = vmul.f32 %v291, %v1679
      %v1714 = vmul.f32 %v292, %v1679
      %v1715 = vmul.f32 %v293, %v1679
      %v1716 = vmul.f32 %v294, %v1679
      %v1717 = vmul.f32 %v295, %v1679
      %v1718 = vmul.f32 %v296, %v1679
      %v1719 = vmul.f32 %v297, %v1679
      %v1720 = vmul.f32 %v298, %v1679
      %v1721 = vmul.f32 %v299, %v1679
      %v1722 = vmul.f32 %v300, %v1679
      %v1723 = vmul.f32 %v301, %v1679
      %v1724 = vmul.f32 %v302, %v1679
      %v1725 = vmul.f32 %v303, %v1679
      %v1726 = vmul.f32 %v304, %v1679
      %v1727 = vmul.f32 %v305, %v1679
      %v1776 = vrot.slane %v1680, 2
      %v1777 = vrot.slane %v1681, 2
      %v1778 = vsel %vm1293, %v1776, %v1777
      %v1779 = vrot.slane %v1682, 2
      %v1780 = vsel %vm1293, %v1777, %v1779
      %v1781 = vrot.slane %v1683, 2
      %v1782 = vrot.slane %v1684, 2
      %v1783 = vsel %vm1293, %v1781, %v1782
      %v1784 = vrot.slane %v1685, 2
      %v1785 = vsel %vm1293, %v1782, %v1784
      %v1786 = vrot.slane %v1686, 2
      %v1787 = vrot.slane %v1687, 2
      %v1788 = vsel %vm1293, %v1786, %v1787
      %v1789 = vrot.slane %v1688, 2
      %v1790 = vsel %vm1293, %v1787, %v1789
      %v1791 = vrot.slane %v1689, 2
      %v1792 = vrot.slane %v1690, 2
      %v1793 = vsel %vm1293, %v1791, %v1792
      %v1794 = vrot.slane %v1691, 2
      %v1795 = vsel %vm1293, %v1792, %v1794
      %v1796 = vrot.slane %v1692, 2
      %v1797 = vrot.slane %v1693, 2
      %v1798 = vsel %vm1293, %v1796, %v1797
      %v1799 = vrot.slane %v1694, 2
      %v1800 = vsel %vm1293, %v1797, %v1799
      %v1801 = vrot.slane %v1695, 2
      %v1802 = vrot.slane %v1696, 2
      %v1803 = vsel %vm1293, %v1801, %v1802
      %v1804 = vrot.slane %v1697, 2
      %v1805 = vsel %vm1293, %v1802, %v1804
      %v1806 = vrot.slane %v1698, 2
      %v1807 = vrot.slane %v1699, 2
      %v1808 = vsel %vm1293, %v1806, %v1807
      %v1809 = vrot.slane %v1700, 2
      %v1810 = vsel %vm1293, %v1807, %v1809
      %v1811 = vrot.slane %v1701, 2
      %v1812 = vrot.slane %v1702, 2
      %v1813 = vsel %vm1293, %v1811, %v1812
      %v1814 = vrot.slane %v1703, 2
      %v1815 = vsel %vm1293, %v1812, %v1814
      %v1816 = vrot.slane %v1704, 2
      %v1817 = vrot.slane %v1705, 2
      %v1818 = vsel %vm1293, %v1816, %v1817
      %v1819 = vrot.slane %v1706, 2
      %v1820 = vsel %vm1293, %v1817, %v1819
      %v1821 = vrot.slane %v1707, 2
      %v1822 = vrot.slane %v1708, 2
      %v1823 = vsel %vm1293, %v1821, %v1822
      %v1824 = vrot.slane %v1709, 2
      %v1825 = vsel %vm1293, %v1822, %v1824
      %v1826 = vrot.slane %v1710, 2
      %v1827 = vrot.slane %v1711, 2
      %v1828 = vsel %vm1293, %v1826, %v1827
      %v1829 = vrot.slane %v1712, 2
      %v1830 = vsel %vm1293, %v1827, %v1829
      %v1831 = vrot.slane %v1713, 2
      %v1832 = vrot.slane %v1714, 2
      %v1833 = vsel %vm1293, %v1831, %v1832
      %v1834 = vrot.slane %v1715, 2
      %v1835 = vsel %vm1293, %v1832, %v1834
      %v1836 = vrot.slane %v1716, 2
      %v1837 = vrot.slane %v1717, 2
      %v1838 = vsel %vm1293, %v1836, %v1837
      %v1839 = vrot.slane %v1718, 2
      %v1840 = vsel %vm1293, %v1837, %v1839
      %v1841 = vrot.slane %v1719, 2
      %v1842 = vrot.slane %v1720, 2
      %v1843 = vsel %vm1293, %v1841, %v1842
      %v1844 = vrot.slane %v1721, 2
      %v1845 = vsel %vm1293, %v1842, %v1844
      %v1846 = vrot.slane %v1722, 2
      %v1847 = vrot.slane %v1723, 2
      %v1848 = vsel %vm1293, %v1846, %v1847
      %v1849 = vrot.slane %v1724, 2
      %v1850 = vsel %vm1293, %v1847, %v1849
      %v1851 = vrot.slane %v1725, 2
      %v1852 = vrot.slane %v1726, 2
      %v1853 = vsel %vm1293, %v1851, %v1852
      %v1854 = vrot.slane %v1727, 2
      %v1855 = vsel %vm1293, %v1852, %v1854
      %v1888 = vadd.f32 %v1647, %v1778
      %v1889 = vadd.f32 %v1648, %v1780
      %v1890 = vadd.f32 %v1649, %v1783
      %v1891 = vadd.f32 %v1650, %v1785
      %v1892 = vadd.f32 %v1651, %v1788
      %v1893 = vadd.f32 %v1652, %v1790
      %v1894 = vadd.f32 %v1653, %v1793
      %v1895 = vadd.f32 %v1654, %v1795
      %v1896 = vadd.f32 %v1655, %v1798
      %v1897 = vadd.f32 %v1656, %v1800
      %v1898 = vadd.f32 %v1657, %v1803
      %v1899 = vadd.f32 %v1658, %v1805
      %v1900 = vadd.f32 %v1659, %v1808
      %v1901 = vadd.f32 %v1660, %v1810
      %v1902 = vadd.f32 %v1661, %v1813
      %v1903 = vadd.f32 %v1662, %v1815
      %v1904 = vadd.f32 %v1663, %v1818
      %v1905 = vadd.f32 %v1664, %v1820
      %v1906 = vadd.f32 %v1665, %v1823
      %v1907 = vadd.f32 %v1666, %v1825
      %v1908 = vadd.f32 %v1667, %v1828
      %v1909 = vadd.f32 %v1668, %v1830
      %v1910 = vadd.f32 %v1669, %v1833
      %v1911 = vadd.f32 %v1670, %v1835
      %v1912 = vadd.f32 %v1671, %v1838
      %v1913 = vadd.f32 %v1672, %v1840
      %v1914 = vadd.f32 %v1673, %v1843
      %v1915 = vadd.f32 %v1674, %v1845
      %v1916 = vadd.f32 %v1675, %v1848
      %v1917 = vadd.f32 %v1676, %v1850
      %v1918 = vadd.f32 %v1677, %v1853
      %v1919 = vadd.f32 %v1678, %v1855
      %v1920 = vld [vmem:[%s2] sm:$0x1]
      %v1922 = vperm.slane %v1920, 0
      %v1924 = vadd.f32 %v1888, %v1922
      %v1925 = vadd.f32 %v1889, %v1922
      %v1926 = vadd.f32 %v1890, %v1922
      %v1927 = vadd.f32 %v1891, %v1922
      %v1928 = vadd.f32 %v1892, %v1922
      %v1929 = vadd.f32 %v1893, %v1922
      %v1930 = vadd.f32 %v1894, %v1922
      %v1931 = vadd.f32 %v1895, %v1922
      %v1932 = vadd.f32 %v1896, %v1922
      %v1933 = vadd.f32 %v1897, %v1922
      %v1934 = vadd.f32 %v1898, %v1922
      %v1935 = vadd.f32 %v1899, %v1922
      %v1936 = vadd.f32 %v1900, %v1922
      %v1937 = vadd.f32 %v1901, %v1922
      %v1938 = vadd.f32 %v1902, %v1922
      %v1939 = vadd.f32 %v1903, %v1922
      %v1940 = vadd.f32 %v1904, %v1922
      %v1941 = vadd.f32 %v1905, %v1922
      %v1942 = vadd.f32 %v1906, %v1922
      %v1943 = vadd.f32 %v1907, %v1922
      %v1944 = vadd.f32 %v1908, %v1922
      %v1945 = vadd.f32 %v1909, %v1922
      %v1946 = vadd.f32 %v1910, %v1922
      %v1947 = vadd.f32 %v1911, %v1922
      %v1948 = vadd.f32 %v1912, %v1922
      %v1949 = vadd.f32 %v1913, %v1922
      %v1950 = vadd.f32 %v1914, %v1922
      %v1951 = vadd.f32 %v1915, %v1922
      %v1952 = vadd.f32 %v1916, %v1922
      %v1953 = vadd.f32 %v1917, %v1922
      %v1954 = vadd.f32 %v1918, %v1922
      %v1955 = vadd.f32 %v1919, %v1922
      %v1956 = vmax.f32 %v1924, 0.0
      %v1957 = vmax.f32 %v1925, 0.0
      %v1958 = vmax.f32 %v1926, 0.0
      %v1959 = vmax.f32 %v1927, 0.0
      %v1960 = vmax.f32 %v1928, 0.0
      %v1961 = vmax.f32 %v1929, 0.0
      %v1962 = vmax.f32 %v1930, 0.0
      %v1963 = vmax.f32 %v1931, 0.0
      %v1964 = vmax.f32 %v1932, 0.0
      %v1965 = vmax.f32 %v1933, 0.0
      %v1966 = vmax.f32 %v1934, 0.0
      %v1967 = vmax.f32 %v1935, 0.0
      %v1968 = vmax.f32 %v1936, 0.0
      %v1969 = vmax.f32 %v1937, 0.0
      %v1970 = vmax.f32 %v1938, 0.0
      %v1971 = vmax.f32 %v1939, 0.0
      %v1972 = vmax.f32 %v1940, 0.0
      %v1973 = vmax.f32 %v1941, 0.0
      %v1974 = vmax.f32 %v1942, 0.0
      %v1975 = vmax.f32 %v1943, 0.0
      %v1976 = vmax.f32 %v1944, 0.0
      %v1977 = vmax.f32 %v1945, 0.0
      %v1978 = vmax.f32 %v1946, 0.0
      %v1979 = vmax.f32 %v1947, 0.0
      %v1980 = vmax.f32 %v1948, 0.0
      %v1981 = vmax.f32 %v1949, 0.0
      %v1982 = vmax.f32 %v1950, 0.0
      %v1983 = vmax.f32 %v1951, 0.0
      %v1984 = vmax.f32 %v1952, 0.0
      %v1985 = vmax.f32 %v1953, 0.0
      %v1986 = vmax.f32 %v1954, 0.0
      %v1987 = vmax.f32 %v1955, 0.0
      %v1988 = vpack.c.bf16 %v1956, %v1956
      %v1989 = vpack.c.bf16 %v1957, %v1957
      %v1990 = vpack.c.bf16 %v1958, %v1958
      %v1991 = vpack.c.bf16 %v1959, %v1959
      %v1992 = vpack.c.bf16 %v1960, %v1960
      %v1993 = vpack.c.bf16 %v1961, %v1961
      %v1994 = vpack.c.bf16 %v1962, %v1962
      %v1995 = vpack.c.bf16 %v1963, %v1963
      %v1996 = vpack.c.bf16 %v1964, %v1964
      %v1997 = vpack.c.bf16 %v1965, %v1965
      %v1998 = vpack.c.bf16 %v1966, %v1966
      %v1999 = vpack.c.bf16 %v1967, %v1967
      %v2000 = vpack.c.bf16 %v1968, %v1968
      %v2001 = vpack.c.bf16 %v1969, %v1969
      %v2002 = vpack.c.bf16 %v1970, %v1970
      %v2003 = vpack.c.bf16 %v1971, %v1971
      %v2004 = vpack.c.bf16 %v1972, %v1972
      %v2005 = vpack.c.bf16 %v1973, %v1973
      %v2006 = vpack.c.bf16 %v1974, %v1974
      %v2007 = vpack.c.bf16 %v1975, %v1975
      %v2008 = vpack.c.bf16 %v1976, %v1976
      %v2009 = vpack.c.bf16 %v1977, %v1977
      %v2010 = vpack.c.bf16 %v1978, %v1978
      %v2011 = vpack.c.bf16 %v1979, %v1979
      %v2012 = vpack.c.bf16 %v1980, %v1980
      %v2013 = vpack.c.bf16 %v1981, %v1981
      %v2014 = vpack.c.bf16 %v1982, %v1982
      %v2015 = vpack.c.bf16 %v1983, %v1983
      %v2016 = vpack.c.bf16 %v1984, %v1984
      %v2017 = vpack.c.bf16 %v1985, %v1985
      %v2018 = vpack.c.bf16 %v1986, %v1986
      %v2019 = vpack.c.bf16 %v1987, %v1987
      %v2020 = vld [vmem:[%s3] sm:$0xf]
      %v2021 = vld [vmem:[%s3 + $0x4] sm:$0xf]
      %v2022 = vld [vmem:[%s4] sm:$0x1]
      %v2024 = vperm.slane %v2022, 0
      %v2058 = vunpack.c.l.b16 %v1988
      %v2059 = vunpack.c.l.b16 %v1989
      %v2060 = vunpack.c.l.b16 %v1990
      %v2061 = vunpack.c.l.b16 %v1991
      %v2062 = vunpack.c.l.b16 %v1992
      %v2063 = vunpack.c.l.b16 %v1993
      %v2064 = vunpack.c.l.b16 %v1994
      %v2065 = vunpack.c.l.b16 %v1995
      %v2066 = vunpack.c.l.b16 %v1996
      %v2067 = vunpack.c.l.b16 %v1997
      %v2068 = vunpack.c.l.b16 %v1998
      %v2069 = vunpack.c.l.b16 %v1999
      %v2070 = vunpack.c.l.b16 %v2000
      %v2071 = vunpack.c.l.b16 %v2001
      %v2072 = vunpack.c.l.b16 %v2002
      %v2073 = vunpack.c.l.b16 %v2003
      %v2074 = vunpack.c.l.b16 %v2004
      %v2075 = vunpack.c.l.b16 %v2005
      %v2076 = vunpack.c.l.b16 %v2006
      %v2077 = vunpack.c.l.b16 %v2007
      %v2078 = vunpack.c.l.b16 %v2008
      %v2079 = vunpack.c.l.b16 %v2009
      %v2080 = vunpack.c.l.b16 %v2010
      %v2081 = vunpack.c.l.b16 %v2011
      %v2082 = vunpack.c.l.b16 %v2012
      %v2083 = vunpack.c.l.b16 %v2013
      %v2084 = vunpack.c.l.b16 %v2014
      %v2085 = vunpack.c.l.b16 %v2015
      %v2086 = vunpack.c.l.b16 %v2016
      %v2087 = vunpack.c.l.b16 %v2017
      %v2088 = vunpack.c.l.b16 %v2018
      %v2089 = vunpack.c.l.b16 %v2019
      %v2090 = vpack.c.b16 %v2059, %v2058
      %v2091 = vpack.c.b16 %v2061, %v2060
      %v2092 = vpack.c.b16 %v2063, %v2062
      %v2093 = vpack.c.b16 %v2065, %v2064
      %v2094 = vpack.c.b16 %v2067, %v2066
      %v2095 = vpack.c.b16 %v2069, %v2068
      %v2096 = vpack.c.b16 %v2071, %v2070
      %v2097 = vpack.c.b16 %v2073, %v2072
      %v2098 = vpack.c.b16 %v2075, %v2074
      %v2099 = vpack.c.b16 %v2077, %v2076
      %v2100 = vpack.c.b16 %v2079, %v2078
      %v2101 = vpack.c.b16 %v2081, %v2080
      %v2102 = vpack.c.b16 %v2083, %v2082
      %v2103 = vpack.c.b16 %v2085, %v2084
      %v2104 = vpack.c.b16 %v2087, %v2086
      %v2105 = vpack.c.b16 %v2089, %v2088
      %v2108 = vunpack.c.l.b16 %v2020
      %v2109 = vunpack.c.l.b16 %v2021
      %v2110 = vpack.c.b16 %v2109, %v2108
      %vm2112 = vcmask 130048
      %v2114 = vsel %vm2112, %v2090, 0
      %v2117 = vsel %vm2112, %v2091, 0
      %v2120 = vsel %vm2112, %v2092, 0
      %v2123 = vsel %vm2112, %v2093, 0
      %v2126 = vsel %vm2112, %v2094, 0
      %v2129 = vsel %vm2112, %v2095, 0
      %v2132 = vsel %vm2112, %v2096, 0
      %v2135 = vsel %vm2112, %v2097, 0
      %v2138 = vsel %vm2112, %v2098, 0
      %v2141 = vsel %vm2112, %v2099, 0
      %v2144 = vsel %vm2112, %v2100, 0
      %v2147 = vsel %vm2112, %v2101, 0
      %v2150 = vsel %vm2112, %v2102, 0
      %v2153 = vsel %vm2112, %v2103, 0
      %v2156 = vsel %vm2112, %v2104, 0
      %v2159 = vsel %vm2112, %v2105, 0
      %2161 = vmatpush.bf16.msra.mxu0 0
      %2162 = vmatpush.bf16.msra.mxu0 0
      %2163 = vmatpush.bf16.msra.mxu0 0
      %2164 = vmatpush.bf16.msra.mxu0 0
      %2165 = vmatpush.bf16.msra.mxu0 0
      %2166 = vmatpush.bf16.msra.mxu0 0
      %2167 = vmatpush.bf16.msra.mxu0 0
      %2168 = vmatpush.bf16.msra.mxu0 %v2110
      %2169 = vmatmul.bf16.gmra.mxu0 %v2114
      %v2170 = vpop.f32.mrf.mxu0
      %v2171 = vadd.f32 %v2024, %v2170
      %v2172 = vpop.f32.mrf.mxu0
      %v2173 = vadd.f32 %v2024, %v2172
      %2174 = vmatmul.bf16.gmra.mxu0 %v2117
      %v2175 = vpop.f32.mrf.mxu0
      %v2176 = vadd.f32 %v2024, %v2175
      %v2177 = vpop.f32.mrf.mxu0
      %v2178 = vadd.f32 %v2024, %v2177
      %2179 = vmatmul.bf16.gmra.mxu0 %v2120
      %v2180 = vpop.f32.mrf.mxu0
      %v2181 = vadd.f32 %v2024, %v2180
      %v2182 = vpop.f32.mrf.mxu0
      %v2183 = vadd.f32 %v2024, %v2182
      %2184 = vmatmul.bf16.gmra.mxu0 %v2123
      %v2185 = vpop.f32.mrf.mxu0
      %v2186 = vadd.f32 %v2024, %v2185
      %v2187 = vpop.f32.mrf.mxu0
      %v2188 = vadd.f32 %v2024, %v2187
      %2189 = vmatmul.bf16.gmra.mxu0 %v2126
      %v2190 = vpop.f32.mrf.mxu0
      %v2191 = vadd.f32 %v2024, %v2190
      %v2192 = vpop.f32.mrf.mxu0
      %v2193 = vadd.f32 %v2024, %v2192
      %2194 = vmatmul.bf16.gmra.mxu0 %v2129
      %v2195 = vpop.f32.mrf.mxu0
      %v2196 = vadd.f32 %v2024, %v2195
      %v2197 = vpop.f32.mrf.mxu0
      %v2198 = vadd.f32 %v2024, %v2197
      %2199 = vmatmul.bf16.gmra.mxu0 %v2132
      %v2200 = vpop.f32.mrf.mxu0
      %v2201 = vadd.f32 %v2024, %v2200
      %v2202 = vpop.f32.mrf.mxu0
      %v2203 = vadd.f32 %v2024, %v2202
      %2204 = vmatmul.bf16.gmra.mxu0 %v2135
      %v2205 = vpop.f32.mrf.mxu0
      %v2206 = vadd.f32 %v2024, %v2205
      %v2207 = vpop.f32.mrf.mxu0
      %v2208 = vadd.f32 %v2024, %v2207
      %2209 = vmatmul.bf16.gmra.mxu0 %v2138
      %v2210 = vpop.f32.mrf.mxu0
      %v2211 = vadd.f32 %v2024, %v2210
      %v2212 = vpop.f32.mrf.mxu0
      %v2213 = vadd.f32 %v2024, %v2212
      %2214 = vmatmul.bf16.gmra.mxu0 %v2141
      %v2215 = vpop.f32.mrf.mxu0
      %v2216 = vadd.f32 %v2024, %v2215
      %v2217 = vpop.f32.mrf.mxu0
      %v2218 = vadd.f32 %v2024, %v2217
      %2219 = vmatmul.bf16.gmra.mxu0 %v2144
      %v2220 = vpop.f32.mrf.mxu0
      %v2221 = vadd.f32 %v2024, %v2220
      %v2222 = vpop.f32.mrf.mxu0
      %v2223 = vadd.f32 %v2024, %v2222
      %2224 = vmatmul.bf16.gmra.mxu0 %v2147
      %v2225 = vpop.f32.mrf.mxu0
      %v2226 = vadd.f32 %v2024, %v2225
      %v2227 = vpop.f32.mrf.mxu0
      %v2228 = vadd.f32 %v2024, %v2227
      %2229 = vmatmul.bf16.gmra.mxu0 %v2150
      %v2230 = vpop.f32.mrf.mxu0
      %v2231 = vadd.f32 %v2024, %v2230
      %v2232 = vpop.f32.mrf.mxu0
      %v2233 = vadd.f32 %v2024, %v2232
      %2234 = vmatmul.bf16.gmra.mxu0 %v2153
      %v2235 = vpop.f32.mrf.mxu0
      %v2236 = vadd.f32 %v2024, %v2235
      %v2237 = vpop.f32.mrf.mxu0
      %v2238 = vadd.f32 %v2024, %v2237
      %2239 = vmatmul.bf16.gmra.mxu0 %v2156
      %v2240 = vpop.f32.mrf.mxu0
      %v2241 = vadd.f32 %v2024, %v2240
      %v2242 = vpop.f32.mrf.mxu0
      %v2243 = vadd.f32 %v2024, %v2242
      %2244 = vmatmul.bf16.gmra.mxu0 %v2159
      %v2245 = vpop.f32.mrf.mxu0
      %v2246 = vadd.f32 %v2024, %v2245
      %v2247 = vpop.f32.mrf.mxu0
      %v2248 = vadd.f32 %v2024, %v2247
      %2249 = vdwg.mxu0
      %v2250 = vmax.f32 %v2171, 0.0
      %v2251 = vmax.f32 %v2173, 0.0
      %v2252 = vmax.f32 %v2176, 0.0
      %v2253 = vmax.f32 %v2178, 0.0
      %v2254 = vmax.f32 %v2181, 0.0
      %v2255 = vmax.f32 %v2183, 0.0
      %v2256 = vmax.f32 %v2186, 0.0
      %v2257 = vmax.f32 %v2188, 0.0
      %v2258 = vmax.f32 %v2191, 0.0
      %v2259 = vmax.f32 %v2193, 0.0
      %v2260 = vmax.f32 %v2196, 0.0
      %v2261 = vmax.f32 %v2198, 0.0
      %v2262 = vmax.f32 %v2201, 0.0
      %v2263 = vmax.f32 %v2203, 0.0
      %v2264 = vmax.f32 %v2206, 0.0
      %v2265 = vmax.f32 %v2208, 0.0
      %v2266 = vmax.f32 %v2211, 0.0
      %v2267 = vmax.f32 %v2213, 0.0
      %v2268 = vmax.f32 %v2216, 0.0
      %v2269 = vmax.f32 %v2218, 0.0
      %v2270 = vmax.f32 %v2221, 0.0
      %v2271 = vmax.f32 %v2223, 0.0
      %v2272 = vmax.f32 %v2226, 0.0
      %v2273 = vmax.f32 %v2228, 0.0
      %v2274 = vmax.f32 %v2231, 0.0
      %v2275 = vmax.f32 %v2233, 0.0
      %v2276 = vmax.f32 %v2236, 0.0
      %v2277 = vmax.f32 %v2238, 0.0
      %v2278 = vmax.f32 %v2241, 0.0
      %v2279 = vmax.f32 %v2243, 0.0
      %v2280 = vmax.f32 %v2246, 0.0
      %v2281 = vmax.f32 %v2248, 0.0
      %2282 = vst [vmem:[%s246] sm:$0xff] %v2250
      %2283 = vst [vmem:[%s246 + $0x8] sm:$0xff] %v2251
      %2284 = vst [vmem:[%s246 + $0x10] sm:$0xff] %v2252
      %2285 = vst [vmem:[%s246 + $0x18] sm:$0xff] %v2253
      %2286 = vst [vmem:[%s246 + $0x20] sm:$0xff] %v2254
      %2287 = vst [vmem:[%s246 + $0x28] sm:$0xff] %v2255
      %2288 = vst [vmem:[%s246 + $0x30] sm:$0xff] %v2256
      %2289 = vst [vmem:[%s246 + $0x38] sm:$0xff] %v2257
      %2290 = vst [vmem:[%s246 + $0x40] sm:$0xff] %v2258
      %2291 = vst [vmem:[%s246 + $0x48] sm:$0xff] %v2259
      %2292 = vst [vmem:[%s246 + $0x50] sm:$0xff] %v2260
      %2293 = vst [vmem:[%s246 + $0x58] sm:$0xff] %v2261
      %2294 = vst [vmem:[%s246 + $0x60] sm:$0xff] %v2262
      %2295 = vst [vmem:[%s246 + $0x68] sm:$0xff] %v2263
      %2296 = vst [vmem:[%s246 + $0x70] sm:$0xff] %v2264
      %2297 = vst [vmem:[%s246 + $0x78] sm:$0xff] %v2265
      %2298 = vst [vmem:[%s246 + $0x80] sm:$0xff] %v2266
      %2299 = vst [vmem:[%s246 + $0x88] sm:$0xff] %v2267
      %2300 = vst [vmem:[%s246 + $0x90] sm:$0xff] %v2268
      %2301 = vst [vmem:[%s246 + $0x98] sm:$0xff] %v2269
      %2302 = vst [vmem:[%s246 + $0xa0] sm:$0xff] %v2270
      %2303 = vst [vmem:[%s246 + $0xa8] sm:$0xff] %v2271
      %2304 = vst [vmem:[%s246 + $0xb0] sm:$0xff] %v2272
      %2305 = vst [vmem:[%s246 + $0xb8] sm:$0xff] %v2273
      %2306 = vst [vmem:[%s246 + $0xc0] sm:$0xff] %v2274
      %2307 = vst [vmem:[%s246 + $0xc8] sm:$0xff] %v2275
      %2308 = vst [vmem:[%s246 + $0xd0] sm:$0xff] %v2276
      %2309 = vst [vmem:[%s246 + $0xd8] sm:$0xff] %v2277
      %2310 = vst [vmem:[%s246 + $0xe0] sm:$0xff] %v2278
      %2311 = vst [vmem:[%s246 + $0xe8] sm:$0xff] %v2279
      %2312 = vst [vmem:[%s246 + $0xf0] sm:$0xff] %v2280
      %2313 = vst [vmem:[%s246 + $0xf8] sm:$0xff] %v2281
      %s2314 = smul.u32 32, %s21
      %p2315 = scmp.lt.s32.totalorder %s20, 1
      %s2316 = scalar_select %p2315, %s20, 1
      %p2317 = scmp.lt.s32.totalorder %s2314, 31
      %s2318 = scalar_select %p2317, %s2314, 31
      %s2319 = smul.addr %s2316, 32
      %s2320 = sadd.s32 %s2318, %s2319
      %s2321 = smul.addr %s2320, 8
      %s2322 = scalar_lea.vmem %s5, %s2321
      // Predicated region
      $region41: #{depthwise_separable_conv.1} parent=39 // pred_check
        %p2323 = pneg %p158
      $region42: #{depthwise_separable_conv.1} parent=39 // pred_check_branch
        %2325 = sbr.rel (%p2323) target = $region44
      $region43: #{depthwise_separable_conv.1} parent=39 // pred_region
        %s2326 = smul.u32 32, %s21
      $region44: #{depthwise_separable_conv.1} parent=39 // pred_fallthru
        _
    $region40: #{depthwise_separable_conv.1} parent=5 // pred_fallthru
      _
    %p2327 = scmp.le.s32.totalorder 2, %s11
    // Predicated region
    $region45: #{depthwise_separable_conv.1} parent=5 // pred_check
      %p2328 = pneg %p2327
    $region46: #{depthwise_separable_conv.1} parent=5 // pred_check_branch
      %2330 = sbr.rel (%p2328) target = $region48
    $region47: #{depthwise_separable_conv.1} parent=5 // pred_region
      %s2331 = ssub.s32 %s11, 2
      // Predicated region
      $region49: #{depthwise_separable_conv.1} parent=47 // pred_check
        %p2332 = pneg %p164
      $region50: #{depthwise_separable_conv.1} parent=47 // pred_check_branch
        %2334 = sbr.rel (%p2332) target = $region52
      $region51: #{depthwise_separable_conv.1} parent=47 // pred_region
        %s2335 = smul.u32 32, %s23
        %p2336 = scmp.lt.s32.totalorder %s22, 1
        %s2337 = scalar_select %p2336, %s22, 1
        %p2338 = scmp.lt.s32.totalorder %s2335, 31
        %s2339 = scalar_select %p2338, %s2335, 31
        %s2340 = smul.addr %s2337, 32
        %s2341 = sadd.s32 %s2339, %s2340
        %s2342 = smul.addr %s2341, 8
        %s2343 = scalar_lea.vmem %s5, %s2342
      $region52: #{depthwise_separable_conv.1} parent=47 // pred_fallthru
        _
    $region48: #{depthwise_separable_conv.1} parent=5 // pred_fallthru
      _
  $region6: #{depthwise_separable_conv.1} parent=0 // loop_footer
    %s15 = sadd.s32 1, %s11
  $region7: #{depthwise_separable_conv.1} parent=0 // loop_footer_branch
    %10 = sbr.rel target = $region3
  $region8: #{depthwise_separable_conv.1} parent=0 // loop_exit
    _

</llo_original>
